<compile_context>
chip_gen: v6e
topology: v6e:2x2x1
jax: 0.10.0
libtpu: 0.0.40
codegen_flags: <defaults>
</compile_context>

<pallas_src>
import functools

import jax
import jax.numpy as jnp
from jax.experimental import pallas as pl
from jax.experimental.pallas import tpu as pltpu


LANE = 128
TILE_M = 256                      # row tile of A_hat (output rows)
TILE_K = 256                      # contraction tile of A_hat (>=256, v5e guidance)
VMEM_LIMIT = 48 * 1024 * 1024     # explicit scoped-VMEM limit, headroom on v7x


def _round_up(v, m):
    return ((v + m - 1) // m) * m


def _pad2(a, rows, cols):
    return jnp.pad(a, ((0, rows - a.shape[0]), (0, cols - a.shape[1])))


# ---------------------------------------------------------------------------
# Kernel 1: layer-1 aggregation fused with both linear layers.
#   acc  = sum_k A[i, k] @ X[k]                       (bf16 MXU, f32 acc)
#   H    = relu(acc @ W1 + rowsum(A)[i] * b1)
#   HW   = H @ [Wm | Ws] + [bm | bs]                  (written bf16)
# ---------------------------------------------------------------------------
def layer1_kernel(a_ref, x_ref, rs_ref, w1_ref, b1_ref, wh_ref, bh_ref,
                  hw_ref, acc_ref):
    k = pl.program_id(1)

    @pl.when(k == 0)
    def _():
        acc_ref[...] = jnp.zeros_like(acc_ref)

    acc_ref[...] += jnp.dot(a_ref[...], x_ref[...],
                            preferred_element_type=jnp.float32)

    @pl.when(k == pl.num_programs(1) - 1)
    def _():
        ax = acc_ref[...].astype(jnp.bfloat16)
        h = jnp.dot(ax, w1_ref[...], preferred_element_type=jnp.float32)
        h = h + rs_ref[...] * b1_ref[...]        # (tm,1) * (1,Hp) broadcast, f32
        h = jnp.maximum(h, 0.0)                  # ReLU (dropout identity in eval)
        hw = jnp.dot(h.astype(jnp.bfloat16), wh_ref[...],
                     preferred_element_type=jnp.float32)
        hw = hw + bh_ref[...]
        hw_ref[...] = hw.astype(hw_ref.dtype)


# ---------------------------------------------------------------------------
# Kernel 2: head aggregation  OUT = A_hat @ HW   (tiled matmul, f32 output)
# ---------------------------------------------------------------------------
def aggregate_kernel(a_ref, hw_ref, out_ref, acc_ref):
    k = pl.program_id(1)

    @pl.when(k == 0)
    def _():
        acc_ref[...] = jnp.zeros_like(acc_ref)

    acc_ref[...] += jnp.dot(a_ref[...], hw_ref[...],
                            preferred_element_type=jnp.float32)

    @pl.when(k == pl.num_programs(1) - 1)
    def _():
        out_ref[...] = acc_ref[...]


def build_normalized_adjacency(edge_index, num_nodes, padded_nodes):
    """Dense A_hat = D^-1/2 (A + I) D^-1/2 at padded size (extra rows/cols 0)."""
    row, col = edge_index[0], edge_index[1]
    loop = jnp.arange(num_nodes, dtype=edge_index.dtype)
    row = jnp.concatenate([row, loop])
    col = jnp.concatenate([col, loop])

    deg = jnp.zeros((padded_nodes,), jnp.float32).at[col].add(1.0)
    deg_inv_sqrt = jnp.where(deg > 0, jax.lax.rsqrt(deg), 0.0)
    norm = deg_inv_sqrt[row] * deg_inv_sqrt[col]

    # out[i] = sum over edges (j -> i) of norm * x[j]  =>  A_hat[i, j]
    a_hat = (jnp.zeros((padded_nodes, padded_nodes), jnp.float32)
             .at[col, row].add(norm))
    return a_hat


@functools.partial(jax.jit, static_argnames=("num_nodes",))
def gcn_forward(x, edge_index, params, num_nodes):
    w1, b1, wm, bm, ws, bs = params
    N, F = x.shape
    H = w1.shape[1]
    O = wm.shape[1]

    tm, tk = TILE_M, TILE_K
    Np = _round_up(num_nodes, max(tm, tk))
    Fp = _round_up(F, LANE)
    Hp = _round_up(H, LANE)
    Wp = _round_up(2 * O, LANE)        # fused mean|stddev head width, lane padded

    # --- plain-JAX graph / parameter prep (zero padding is exact) -----------
    a_hat = build_normalized_adjacency(edge_index, num_nodes, Np)
    rowsum = jnp.sum(a_hat, axis=1, keepdims=True)                # (Np, 1) f32
    a_bf = a_hat.astype(jnp.bfloat16)

    x_p = _pad2(x, Np, Fp).astype(jnp.bfloat16)
    w1_p = _pad2(w1, Fp, Hp).astype(jnp.bfloat16)
    b1_p = _pad2(b1, 1, Hp)                                        # f32
    w_heads = _pad2(jnp.concatenate([wm, ws], axis=1), Hp, Wp).astype(jnp.bfloat16)
    b_heads = _pad2(jnp.concatenate([bm, bs], axis=1), 1, Wp)      # f32

    grid = (Np // tm, Np // tk)
    cparams = pltpu.CompilerParams(
        dimension_semantics=("parallel", "arbitrary"),
        vmem_limit_bytes=VMEM_LIMIT,
    )

    # --- call 1: HW = relu((A@X)@W1 + rowsum*b1) @ [Wm|Ws] + [bm|bs] --------
    hw = pl.pallas_call(
        layer1_kernel,
        out_shape=jax.ShapeDtypeStruct((Np, Wp), jnp.bfloat16),
        grid_spec=pltpu.PrefetchScalarGridSpec(
            num_scalar_prefetch=0,
            grid=grid,
            in_specs=[
                pl.BlockSpec((tm, tk), lambda i, k: (i, k)),    # A_hat tile
                pl.BlockSpec((tk, Fp), lambda i, k: (k, 0)),    # X tile
                pl.BlockSpec((tm, 1), lambda i, k: (i, 0)),     # rowsum(A)
                pl.BlockSpec((Fp, Hp), lambda i, k: (0, 0)),    # W1 (resident)
                pl.BlockSpec((1, Hp), lambda i, k: (0, 0)),     # b1
                pl.BlockSpec((Hp, Wp), lambda i, k: (0, 0)),    # [Wm|Ws]
                pl.BlockSpec((1, Wp), lambda i, k: (0, 0)),     # [bm|bs]
            ],
            out_specs=pl.BlockSpec((tm, Wp), lambda i, k: (i, 0)),
            scratch_shapes=[pltpu.VMEM((tm, Fp), jnp.float32)],
        ),
        compiler_params=cparams,
    )(a_bf, x_p, rowsum, w1_p, b1_p, w_heads, b_heads)

    # --- call 2: OUT = A_hat @ HW  (both heads at once) ---------------------
    out = pl.pallas_call(
        aggregate_kernel,
        out_shape=jax.ShapeDtypeStruct((Np, Wp), jnp.float32),
        grid_spec=pltpu.PrefetchScalarGridSpec(
            num_scalar_prefetch=0,
            grid=grid,
            in_specs=[
                pl.BlockSpec((tm, tk), lambda i, k: (i, k)),    # A_hat tile
                pl.BlockSpec((tk, Wp), lambda i, k: (k, 0)),    # HW tile
            ],
            out_specs=pl.BlockSpec((tm, Wp), lambda i, k: (i, 0)),
            scratch_shapes=[pltpu.VMEM((tm, Wp), jnp.float32)],
        ),
        compiler_params=cparams,
    )(a_bf, hw)

    out_mean = out[:num_nodes, :O]
    out_stddev = out[:num_nodes, O:2 * O]
    return out_mean, out_stddev


def init_linear(key, fan_in, fan_out):
    """Deterministic torch.nn.Linear-style init: U(-1/sqrt(fan_in), +1/sqrt(fan_in))."""
    kw, kb = jax.random.split(key)
    bound = 1.0 / (fan_in ** 0.5)
    w = jax.random.uniform(kw, (fan_in, fan_out), jnp.float32, -bound, bound)
    b = jax.random.uniform(kb, (1, fan_out), jnp.float32, -bound, bound)
    return w, b


def gcn_reference(x, edge_index, params, num_nodes):
    """Pure-JAX f32 reference of the same forward (for a sanity check)."""
    a_hat = build_normalized_adjacency(edge_index, num_nodes, num_nodes)
    w1, b1, wm, bm, ws, bs = params
    h = a_hat @ (x @ w1 + b1)
    h = jnp.maximum(h, 0.0)
    mean = a_hat @ (h @ wm + bm)
    std = a_hat @ (h @ ws + bs)
    return mean, std


if __name__ == "__main__":
    key = jax.random.PRNGKey(0)
    k_x, k_e1, k_e2, k_l1, k_lm, k_ls = jax.random.split(key, 6)

    # Small synthetic graph consistent with the module's forward.
    num_nodes = 32
    num_features = 16
    hidden_dim = 32
    out_size = 8
    num_edges = 64

    x = jax.random.normal(k_x, (num_nodes, num_features), jnp.float32)
    src = jax.random.randint(k_e1, (num_edges,), 0, num_nodes, jnp.int32)
    dst = jax.random.randint(k_e2, (num_edges,), 0, num_nodes, jnp.int32)
    edge_index = jnp.stack([src, dst], axis=0)  # [2, E]

    # Parameters: conv1 (F->H), conv_mean (H->O), conv_stddev (H->O)
    w1, b1 = init_linear(k_l1, num_features, hidden_dim)
    wm, bm = init_linear(k_lm, hidden_dim, out_size)
    ws, bs = init_linear(k_ls, hidden_dim, out_size)
    params = (w1, b1, wm, bm, ws, bs)

    out_mean, out_stddev = gcn_forward(x, edge_index, params, num_nodes)
    jax.block_until_ready((out_mean, out_stddev))

    # Sanity check against pure-JAX f32 reference (bf16 MXU path -> looser tol).
    ref_mean, ref_stddev = gcn_reference(x, edge_index, params, num_nodes)
    assert out_mean.shape == (num_nodes, out_size)
    assert out_stddev.shape == (num_nodes, out_size)
    assert jnp.allclose(out_mean, ref_mean, atol=5e-2, rtol=5e-2)
    assert jnp.allclose(out_stddev, ref_stddev, atol=5e-2, rtol=5e-2)

    print("KERNEL_OK")
</pallas_src>

<mosaic_0001>
module attributes {stable_mosaic.version = 11 : i64} {
  func.func private @main(%arg0: i32) attributes {dimension_semantics = [#tpu.dimension_semantics<core_parallel>], iteration_bounds = array<i64: 2>, tpu.core_type = #tpu.core_type<sc_scalar_subcore>, window_params = []} {
    return
  }
}

module attributes {stable_mosaic.version = 11 : i64} {
  func.func private @main(%arg0: i32) attributes {dimension_semantics = [#tpu.dimension_semantics<core_parallel>], iteration_bounds = array<i64: 2>, tpu.core_type = #tpu.core_type<sc_scalar_subcore>, window_params = []} {
    return
  }
}

module attributes {stable_mosaic.version = 11 : i64} {
  func.func @aggregate_kernel(%arg0: i32, %arg1: i32, %arg2: memref<256x256xbf16, #tpu.memory_space<vmem>>, %arg3: memref<256x128xbf16, #tpu.memory_space<vmem>>, %arg4: memref<256x128xf32, #tpu.memory_space<vmem>>, %arg5: memref<256x128xf32, #tpu.memory_space<vmem>>) attributes {dimension_semantics = [#tpu.dimension_semantics<parallel>, #tpu.dimension_semantics<arbitrary>], iteration_bounds = array<i64: 1, 1>, scalar_prefetch = 0 : i64, scratch_operands = 1 : i64, tpu.core_type = #tpu.core_type<tc>, window_params = [{transform_indices = @transform_0, window_bounds = array<i64: 256, 256>}, {transform_indices = @transform_1, window_bounds = array<i64: 256, 128>}, {transform_indices = @transform_2, window_bounds = array<i64: 256, 128>}]} {
    %c0_i32 = arith.constant 0 : i32
    %0 = arith.cmpi eq, %arg1, %c0_i32 : i32
    %1 = arith.extui %0 : i1 to i32
    %c0_i32_0 = arith.constant 0 : i32
    %2 = arith.cmpi ne, %1, %c0_i32_0 : i32
    scf.if %2 {
      %cst_10 = arith.constant 0.000000e+00 : f32
      %12 = vector.broadcast %cst_10 : f32 to vector<256x128xf32>
      %c0_11 = arith.constant 0 : index
      %c0_12 = arith.constant 0 : index
      %13 = vector.load %arg5[%c0_11, %c0_12] : memref<256x128xf32, #tpu.memory_space<vmem>>, vector<256x128xf32>
      tpu.vector_store %arg5[%c0_11, %c0_12], %12 {strides = array<i32>} : memref<256x128xf32, #tpu.memory_space<vmem>>, vector<256x128xf32>,
    } else {
    }
    %c0 = arith.constant 0 : index
    %c0_1 = arith.constant 0 : index
    %3 = vector.load %arg5[%c0, %c0_1] : memref<256x128xf32, #tpu.memory_space<vmem>>, vector<256x128xf32>
    %c0_2 = arith.constant 0 : index
    %c0_3 = arith.constant 0 : index
    %4 = vector.load %arg2[%c0_2, %c0_3] : memref<256x256xbf16, #tpu.memory_space<vmem>>, vector<256x256xbf16>
    %c0_4 = arith.constant 0 : index
    %c0_5 = arith.constant 0 : index
    %5 = vector.load %arg3[%c0_4, %c0_5] : memref<256x128xbf16, #tpu.memory_space<vmem>>, vector<256x128xbf16>
    %cst = arith.constant dense<0.000000e+00> : vector<256x128xf32>
    %6 = tpu.matmul %4, %5, %cst {dimension_numbers = #tpu.dot_dimension_numbers<[1], [0], [0], [1], [0, 0, 1, 1], [], []>} : vector<256x256xbf16>, vector<256x128xbf16>, vector<256x128xf32> -> vector<256x128xf32>
    %7 = arith.addf %3, %6 : vector<256x128xf32>
    %c0_6 = arith.constant 0 : index
    %c0_7 = arith.constant 0 : index
    %8 = vector.load %arg5[%c0_6, %c0_7] : memref<256x128xf32, #tpu.memory_space<vmem>>, vector<256x128xf32>
    tpu.vector_store %arg5[%c0_6, %c0_7], %7 {strides = array<i32>} : memref<256x128xf32, #tpu.memory_space<vmem>>, vector<256x128xf32>,
    %c0_i32_8 = arith.constant 0 : i32
    %9 = arith.cmpi eq, %arg1, %c0_i32_8 : i32
    %10 = arith.extui %9 : i1 to i32
    %c0_i32_9 = arith.constant 0 : i32
    %11 = arith.cmpi ne, %10, %c0_i32_9 : i32
    scf.if %11 {
      %c0_10 = arith.constant 0 : index
      %c0_11 = arith.constant 0 : index
      %12 = vector.load %arg5[%c0_10, %c0_11] : memref<256x128xf32, #tpu.memory_space<vmem>>, vector<256x128xf32>
      %c0_12 = arith.constant 0 : index
      %c0_13 = arith.constant 0 : index
      %13 = vector.load %arg4[%c0_12, %c0_13] : memref<256x128xf32, #tpu.memory_space<vmem>>, vector<256x128xf32>
      tpu.vector_store %arg4[%c0_12, %c0_13], %12 {strides = array<i32>} : memref<256x128xf32, #tpu.memory_space<vmem>>, vector<256x128xf32>,
    } else {
    }
    return
  }
  func.func @transform_0(%arg0: i32, %arg1: i32) -> (i32, i32) {
    %c0_i32 = arith.constant 0 : i32
    return %arg0, %arg1 : i32, i32
  }
  func.func @transform_1(%arg0: i32, %arg1: i32) -> (i32, i32) {
    %c0_i32 = arith.constant 0 : i32
    %c0_i32_0 = arith.constant 0 : i32
    return %arg1, %c0_i32 : i32, i32
  }
  func.func @transform_2(%arg0: i32, %arg1: i32) -> (i32, i32) {
    %c0_i32 = arith.constant 0 : i32
    %c0_i32_0 = arith.constant 0 : i32
    return %arg0, %c0_i32 : i32, i32
  }
}

module attributes {stable_mosaic.version = 11 : i64} {
  func.func @layer1_kernel(%arg0: i32, %arg1: i32, %arg2: memref<256x256xbf16, #tpu.memory_space<vmem>>, %arg3: memref<256x128xbf16, #tpu.memory_space<vmem>>, %arg4: memref<256x1xf32, #tpu.memory_space<vmem>>, %arg5: memref<128x128xbf16, #tpu.memory_space<vmem>>, %arg6: memref<1x128xf32, #tpu.memory_space<vmem>>, %arg7: memref<128x128xbf16, #tpu.memory_space<vmem>>, %arg8: memref<1x128xf32, #tpu.memory_space<vmem>>, %arg9: memref<256x128xbf16, #tpu.memory_space<vmem>>, %arg10: memref<256x128xf32, #tpu.memory_space<vmem>>) attributes {dimension_semantics = [#tpu.dimension_semantics<parallel>, #tpu.dimension_semantics<arbitrary>], iteration_bounds = array<i64: 1, 1>, scalar_prefetch = 0 : i64, scratch_operands = 1 : i64, tpu.core_type = #tpu.core_type<tc>, window_params = [{transform_indices = @transform_0, window_bounds = array<i64: 256, 256>}, {transform_indices = @transform_1, window_bounds = array<i64: 256, 128>}, {transform_indices = @transform_2, window_bounds = array<i64: 256, 1>}, {pipeline_mode = #tpu.pipeline_mode<synchronous>, transform_indices = @transform_3, window_bounds = array<i64: 128, 128>}, {pipeline_mode = #tpu.pipeline_mode<synchronous>, transform_indices = @transform_4, window_bounds = array<i64: 1, 128>}, {pipeline_mode = #tpu.pipeline_mode<synchronous>, transform_indices = @transform_5, window_bounds = array<i64: 128, 128>}, {pipeline_mode = #tpu.pipeline_mode<synchronous>, transform_indices = @transform_6, window_bounds = array<i64: 1, 128>}, {transform_indices = @transform_7, window_bounds = array<i64: 256, 128>}]} {
    %c0_i32 = arith.constant 0 : i32
    %0 = arith.cmpi eq, %arg1, %c0_i32 : i32
    %1 = arith.extui %0 : i1 to i32
    %c0_i32_0 = arith.constant 0 : i32
    %2 = arith.cmpi ne, %1, %c0_i32_0 : i32
    scf.if %2 {
      %cst_10 = arith.constant 0.000000e+00 : f32
      %12 = vector.broadcast %cst_10 : f32 to vector<256x128xf32>
      %c0_11 = arith.constant 0 : index
      %c0_12 = arith.constant 0 : index
      %13 = vector.load %arg10[%c0_11, %c0_12] : memref<256x128xf32, #tpu.memory_space<vmem>>, vector<256x128xf32>
      tpu.vector_store %arg10[%c0_11, %c0_12], %12 {strides = array<i32>} : memref<256x128xf32, #tpu.memory_space<vmem>>, vector<256x128xf32>,
    } else {
    }
    %c0 = arith.constant 0 : index
    %c0_1 = arith.constant 0 : index
    %3 = vector.load %arg10[%c0, %c0_1] : memref<256x128xf32, #tpu.memory_space<vmem>>, vector<256x128xf32>
    %c0_2 = arith.constant 0 : index
    %c0_3 = arith.constant 0 : index
    %4 = vector.load %arg2[%c0_2, %c0_3] : memref<256x256xbf16, #tpu.memory_space<vmem>>, vector<256x256xbf16>
    %c0_4 = arith.constant 0 : index
    %c0_5 = arith.constant 0 : index
    %5 = vector.load %arg3[%c0_4, %c0_5] : memref<256x128xbf16, #tpu.memory_space<vmem>>, vector<256x128xbf16>
    %cst = arith.constant dense<0.000000e+00> : vector<256x128xf32>
    %6 = tpu.matmul %4, %5, %cst {dimension_numbers = #tpu.dot_dimension_numbers<[1], [0], [0], [1], [0, 0, 1, 1], [], []>} : vector<256x256xbf16>, vector<256x128xbf16>, vector<256x128xf32> -> vector<256x128xf32>
    %7 = arith.addf %3, %6 : vector<256x128xf32>
    %c0_6 = arith.constant 0 : index
    %c0_7 = arith.constant 0 : index
    %8 = vector.load %arg10[%c0_6, %c0_7] : memref<256x128xf32, #tpu.memory_space<vmem>>, vector<256x128xf32>
    tpu.vector_store %arg10[%c0_6, %c0_7], %7 {strides = array<i32>} : memref<256x128xf32, #tpu.memory_space<vmem>>, vector<256x128xf32>,
    %c0_i32_8 = arith.constant 0 : i32
    %9 = arith.cmpi eq, %arg1, %c0_i32_8 : i32
    %10 = arith.extui %9 : i1 to i32
    %c0_i32_9 = arith.constant 0 : i32
    %11 = arith.cmpi ne, %10, %c0_i32_9 : i32
    scf.if %11 {
      %c0_10 = arith.constant 0 : index
      %c0_11 = arith.constant 0 : index
      %12 = vector.load %arg10[%c0_10, %c0_11] : memref<256x128xf32, #tpu.memory_space<vmem>>, vector<256x128xf32>
      %13 = arith.truncf %12 : vector<256x128xf32> to vector<256x128xbf16>
      %c0_12 = arith.constant 0 : index
      %c0_13 = arith.constant 0 : index
      %14 = vector.load %arg5[%c0_12, %c0_13] : memref<128x128xbf16, #tpu.memory_space<vmem>>, vector<128x128xbf16>
      %cst_14 = arith.constant dense<0.000000e+00> : vector<256x128xf32>
      %15 = tpu.matmul %13, %14, %cst_14 {dimension_numbers = #tpu.dot_dimension_numbers<[1], [0], [0], [1], [0, 0, 1, 1], [], []>} : vector<256x128xbf16>, vector<128x128xbf16>, vector<256x128xf32> -> vector<256x128xf32>
      %c0_15 = arith.constant 0 : index
      %c0_16 = arith.constant 0 : index
      %16 = vector.load %arg4[%c0_15, %c0_16] : memref<256x1xf32, #tpu.memory_space<vmem>>, vector<256x1xf32>
      %c0_17 = arith.constant 0 : index
      %c0_18 = arith.constant 0 : index
      %17 = vector.load %arg6[%c0_17, %c0_18] : memref<1x128xf32, #tpu.memory_space<vmem>>, vector<1x128xf32>
      %18 = vector.broadcast %16 : vector<256x1xf32> to vector<256x128xf32>
      %19 = vector.broadcast %17 : vector<1x128xf32> to vector<256x128xf32>
      %20 = arith.mulf %18, %19 : vector<256x128xf32>
      %21 = arith.addf %15, %20 : vector<256x128xf32>
      %cst_19 = arith.constant 0.000000e+00 : f32
      %22 = vector.broadcast %cst_19 : f32 to vector<256x128xf32>
      %23 = arith.maximumf %21, %22 : vector<256x128xf32>
      %24 = arith.truncf %23 : vector<256x128xf32> to vector<256x128xbf16>
      %c0_20 = arith.constant 0 : index
      %c0_21 = arith.constant 0 : index
      %25 = vector.load %arg7[%c0_20, %c0_21] : memref<128x128xbf16, #tpu.memory_space<vmem>>, vector<128x128xbf16>
      %cst_22 = arith.constant dense<0.000000e+00> : vector<256x128xf32>
      %26 = tpu.matmul %24, %25, %cst_22 {dimension_numbers = #tpu.dot_dimension_numbers<[1], [0], [0], [1], [0, 0, 1, 1], [], []>} : vector<256x128xbf16>, vector<128x128xbf16>, vector<256x128xf32> -> vector<256x128xf32>
      %c0_23 = arith.constant 0 : index
      %c0_24 = arith.constant 0 : index
      %27 = vector.load %arg8[%c0_23, %c0_24] : memref<1x128xf32, #tpu.memory_space<vmem>>, vector<1x128xf32>
      %28 = vector.broadcast %27 : vector<1x128xf32> to vector<256x128xf32>
      %29 = arith.addf %26, %28 : vector<256x128xf32>
      %30 = arith.truncf %29 : vector<256x128xf32> to vector<256x128xbf16>
      %c0_25 = arith.constant 0 : index
      %c0_26 = arith.constant 0 : index
      %31 = vector.load %arg9[%c0_25, %c0_26] : memref<256x128xbf16, #tpu.memory_space<vmem>>, vector<256x128xbf16>
      tpu.vector_store %arg9[%c0_25, %c0_26], %30 {strides = array<i32>} : memref<256x128xbf16, #tpu.memory_space<vmem>>, vector<256x128xbf16>,
    } else {
    }
    return
  }
  func.func @transform_0(%arg0: i32, %arg1: i32) -> (i32, i32) {
    %c0_i32 = arith.constant 0 : i32
    return %arg0, %arg1 : i32, i32
  }
  func.func @transform_1(%arg0: i32, %arg1: i32) -> (i32, i32) {
    %c0_i32 = arith.constant 0 : i32
    %c0_i32_0 = arith.constant 0 : i32
    return %arg1, %c0_i32 : i32, i32
  }
  func.func @transform_2(%arg0: i32, %arg1: i32) -> (i32, i32) {
    %c0_i32 = arith.constant 0 : i32
    %c0_i32_0 = arith.constant 0 : i32
    return %arg0, %c0_i32 : i32, i32
  }
  func.func @transform_3(%arg0: i32, %arg1: i32) -> (i32, i32) {
    %c0_i32 = arith.constant 0 : i32
    %c0_i32_0 = arith.constant 0 : i32
    %c0_i32_1 = arith.constant 0 : i32
    return %c0_i32, %c0_i32_0 : i32, i32
  }
  func.func @transform_4(%arg0: i32, %arg1: i32) -> (i32, i32) {
    %c0_i32 = arith.constant 0 : i32
    %c0_i32_0 = arith.constant 0 : i32
    %c0_i32_1 = arith.constant 0 : i32
    return %c0_i32, %c0_i32_0 : i32, i32
  }
  func.func @transform_5(%arg0: i32, %arg1: i32) -> (i32, i32) {
    %c0_i32 = arith.constant 0 : i32
    %c0_i32_0 = arith.constant 0 : i32
    %c0_i32_1 = arith.constant 0 : i32
    return %c0_i32, %c0_i32_0 : i32, i32
  }
  func.func @transform_6(%arg0: i32, %arg1: i32) -> (i32, i32) {
    %c0_i32 = arith.constant 0 : i32
    %c0_i32_0 = arith.constant 0 : i32
    %c0_i32_1 = arith.constant 0 : i32
    return %c0_i32, %c0_i32_0 : i32, i32
  }
  func.func @transform_7(%arg0: i32, %arg1: i32) -> (i32, i32) {
    %c0_i32 = arith.constant 0 : i32
    %c0_i32_0 = arith.constant 0 : i32
    return %arg0, %c0_i32 : i32, i32
  }
}

</mosaic_0001>

<llo_original>
// kernel: mul.1
$region0: #{mul.1}
  #allocation0 [shape = 's32[1]{0}', space=sflag, size = 0x4, scoped, tag = 'scoped memory for mul.1']
  %s0 = inlined_call_operand.vmem [shape: f32[96], index: 0, kind: input, shape index: {}]
  %s1 = inlined_call_operand.vmem [shape: f32[96], index: 1, kind: input, shape index: {}]
  %s2 = inlined_call_operand.vmem [shape: f32[96], index: 2, kind: output, shape index: {}]
  %v3 = vld [vmem:[%s0] sm:$0x1]
  %v4 = vld [vmem:[%s1] sm:$0x1]
  %5 = xla_tuple %v3, %v4
  %6 = xla_tuple %5
  %v7 = vmul.f32 %v3, %v4
  %8 = xla_tuple %v7
  %9 = vst [vmem:[%s2] sm:$0x1] %v7

// kernel: gcn_forward.3
$region0: #{gcn_forward.3}
  #allocation0 [shape = 'u32[]', space=smem, size = 0x4, offset = 0x4, fixed_abs, tag = 'smem constant byte address 0x4 - core index']
  #allocation1 [shape = 'u32[144,128]{1,0:T(1,128)}', space=vmem, size = 0x12000, scoped, tag = 'internal scratch']
  #allocation2 [shape = 'f32[256,128]{1,0:T(8,128)}', space=vmem, size = 0x20000, scoped, tag = 'scratch operand']
  %s0 = inlined_call_operand.vmem [shape: bf16[256,256], index: 0, kind: input, shape index: {}]
  %s1 = inlined_call_operand.vmem [shape: bf16[256,128], index: 1, kind: input, shape index: {}]
  %s2 = inlined_call_operand.vmem [shape: f32[256,128], index: 2, kind: output, shape index: {}]
  %s3 = sld [smem:[#allocation0]]
  $region26: #{gcn_forward.3} parent=0
    _
  %s5 = ssub.s32 1, %s3
  %s6 = scalar_select 0, %s5, %s3
  // Predicated region
  $region2: #{gcn_forward.3} parent=0 // pred_check
    _
  $region3: #{gcn_forward.3} parent=0 // pred_check_branch
    %8 = sbr.rel (0) target = $region5
  $region4: #{gcn_forward.3} parent=0 // pred_region
    _
  $region5: #{gcn_forward.3} parent=0 // pred_fallthru
    _
  // Predicated region
  $region6: #{gcn_forward.3} parent=0 // pred_check
    _
  $region7: #{gcn_forward.3} parent=0 // pred_check_branch
    %10 = sbr.rel (0) target = $region9
  $region8: #{gcn_forward.3} parent=0 // pred_region
    _
  $region9: #{gcn_forward.3} parent=0 // pred_fallthru
    _
  %p12 = scmp.eq.s32.totalorder 0, 0
  // Predicated region
  $region10: #{gcn_forward.3} parent=0 // pred_check
    %p13 = pneg %p12
  $region11: #{gcn_forward.3} parent=0 // pred_check_branch
    %15 = sbr.rel (%p13) target = $region13
  $region12: #{gcn_forward.3} parent=0 // pred_region
    %16 = vst [vmem:[#allocation2] sm:$0xff] 0.0
    %17 = vst [vmem:[#allocation2 + $0x8] sm:$0xff] 0.0
    %18 = vst [vmem:[#allocation2 + $0x10] sm:$0xff] 0.0
    %19 = vst [vmem:[#allocation2 + $0x18] sm:$0xff] 0.0
    %20 = vst [vmem:[#allocation2 + $0x20] sm:$0xff] 0.0
    %21 = vst [vmem:[#allocation2 + $0x28] sm:$0xff] 0.0
    %22 = vst [vmem:[#allocation2 + $0x30] sm:$0xff] 0.0
    %23 = vst [vmem:[#allocation2 + $0x38] sm:$0xff] 0.0
    %24 = vst [vmem:[#allocation2 + $0x40] sm:$0xff] 0.0
    %25 = vst [vmem:[#allocation2 + $0x48] sm:$0xff] 0.0
    %26 = vst [vmem:[#allocation2 + $0x50] sm:$0xff] 0.0
    %27 = vst [vmem:[#allocation2 + $0x58] sm:$0xff] 0.0
    %28 = vst [vmem:[#allocation2 + $0x60] sm:$0xff] 0.0
    %29 = vst [vmem:[#allocation2 + $0x68] sm:$0xff] 0.0
    %30 = vst [vmem:[#allocation2 + $0x70] sm:$0xff] 0.0
    %31 = vst [vmem:[#allocation2 + $0x78] sm:$0xff] 0.0
    %32 = vst [vmem:[#allocation2 + $0x80] sm:$0xff] 0.0
    %33 = vst [vmem:[#allocation2 + $0x88] sm:$0xff] 0.0
    %34 = vst [vmem:[#allocation2 + $0x90] sm:$0xff] 0.0
    %35 = vst [vmem:[#allocation2 + $0x98] sm:$0xff] 0.0
    %36 = vst [vmem:[#allocation2 + $0xa0] sm:$0xff] 0.0
    %37 = vst [vmem:[#allocation2 + $0xa8] sm:$0xff] 0.0
    %38 = vst [vmem:[#allocation2 + $0xb0] sm:$0xff] 0.0
    %39 = vst [vmem:[#allocation2 + $0xb8] sm:$0xff] 0.0
    %40 = vst [vmem:[#allocation2 + $0xc0] sm:$0xff] 0.0
    %41 = vst [vmem:[#allocation2 + $0xc8] sm:$0xff] 0.0
    %42 = vst [vmem:[#allocation2 + $0xd0] sm:$0xff] 0.0
    %43 = vst [vmem:[#allocation2 + $0xd8] sm:$0xff] 0.0
    %44 = vst [vmem:[#allocation2 + $0xe0] sm:$0xff] 0.0
    %45 = vst [vmem:[#allocation2 + $0xe8] sm:$0xff] 0.0
    %46 = vst [vmem:[#allocation2 + $0xf0] sm:$0xff] 0.0
    %47 = vst [vmem:[#allocation2 + $0xf8] sm:$0xff] 0.0
  $region13: #{gcn_forward.3} parent=0 // pred_fallthru
    _
  %v48 = vld [vmem:[#allocation2] sm:$0xff]
  %v49 = vld [vmem:[#allocation2 + $0x8] sm:$0xff]
  %v50 = vld [vmem:[#allocation2 + $0x10] sm:$0xff]
  %v51 = vld [vmem:[#allocation2 + $0x18] sm:$0xff]
  %v52 = vld [vmem:[#allocation2 + $0x20] sm:$0xff]
  %v53 = vld [vmem:[#allocation2 + $0x28] sm:$0xff]
  %v54 = vld [vmem:[#allocation2 + $0x30] sm:$0xff]
  %v55 = vld [vmem:[#allocation2 + $0x38] sm:$0xff]
  %v56 = vld [vmem:[#allocation2 + $0x40] sm:$0xff]
  %v57 = vld [vmem:[#allocation2 + $0x48] sm:$0xff]
  %v58 = vld [vmem:[#allocation2 + $0x50] sm:$0xff]
  %v59 = vld [vmem:[#allocation2 + $0x58] sm:$0xff]
  %v60 = vld [vmem:[#allocation2 + $0x60] sm:$0xff]
  %v61 = vld [vmem:[#allocation2 + $0x68] sm:$0xff]
  %v62 = vld [vmem:[#allocation2 + $0x70] sm:$0xff]
  %v63 = vld [vmem:[#allocation2 + $0x78] sm:$0xff]
  %v64 = vld [vmem:[#allocation2 + $0x80] sm:$0xff]
  %v65 = vld [vmem:[#allocation2 + $0x88] sm:$0xff]
  %v66 = vld [vmem:[#allocation2 + $0x90] sm:$0xff]
  %v67 = vld [vmem:[#allocation2 + $0x98] sm:$0xff]
  %v68 = vld [vmem:[#allocation2 + $0xa0] sm:$0xff]
  %v69 = vld [vmem:[#allocation2 + $0xa8] sm:$0xff]
  %v70 = vld [vmem:[#allocation2 + $0xb0] sm:$0xff]
  %v71 = vld [vmem:[#allocation2 + $0xb8] sm:$0xff]
  %v72 = vld [vmem:[#allocation2 + $0xc0] sm:$0xff]
  %v73 = vld [vmem:[#allocation2 + $0xc8] sm:$0xff]
  %v74 = vld [vmem:[#allocation2 + $0xd0] sm:$0xff]
  %v75 = vld [vmem:[#allocation2 + $0xd8] sm:$0xff]
  %v76 = vld [vmem:[#allocation2 + $0xe0] sm:$0xff]
  %v77 = vld [vmem:[#allocation2 + $0xe8] sm:$0xff]
  %v78 = vld [vmem:[#allocation2 + $0xf0] sm:$0xff]
  %v79 = vld [vmem:[#allocation2 + $0xf8] sm:$0xff]
  %v80 = vld [vmem:[%s0] sm:$0xff]
  %v81 = vld [vmem:[%s0 + $0x8] sm:$0xff]
  %v82 = vld [vmem:[%s0 + $0x10] sm:$0xff]
  %v83 = vld [vmem:[%s0 + $0x18] sm:$0xff]
  %v84 = vld [vmem:[%s0 + $0x20] sm:$0xff]
  %v85 = vld [vmem:[%s0 + $0x28] sm:$0xff]
  %v86 = vld [vmem:[%s0 + $0x30] sm:$0xff]
  %v87 = vld [vmem:[%s0 + $0x38] sm:$0xff]
  %v88 = vld [vmem:[%s0 + $0x40] sm:$0xff]
  %v89 = vld [vmem:[%s0 + $0x48] sm:$0xff]
  %v90 = vld [vmem:[%s0 + $0x50] sm:$0xff]
  %v91 = vld [vmem:[%s0 + $0x58] sm:$0xff]
  %v92 = vld [vmem:[%s0 + $0x60] sm:$0xff]
  %v93 = vld [vmem:[%s0 + $0x68] sm:$0xff]
  %v94 = vld [vmem:[%s0 + $0x70] sm:$0xff]
  %v95 = vld [vmem:[%s0 + $0x78] sm:$0xff]
  %v96 = vld [vmem:[%s0 + $0x80] sm:$0xff]
  %v97 = vld [vmem:[%s0 + $0x88] sm:$0xff]
  %v98 = vld [vmem:[%s0 + $0x90] sm:$0xff]
  %v99 = vld [vmem:[%s0 + $0x98] sm:$0xff]
  %v100 = vld [vmem:[%s0 + $0xa0] sm:$0xff]
  %v101 = vld [vmem:[%s0 + $0xa8] sm:$0xff]
  %v102 = vld [vmem:[%s0 + $0xb0] sm:$0xff]
  %v103 = vld [vmem:[%s0 + $0xb8] sm:$0xff]
  %v104 = vld [vmem:[%s0 + $0xc0] sm:$0xff]
  %v105 = vld [vmem:[%s0 + $0xc8] sm:$0xff]
  %v106 = vld [vmem:[%s0 + $0xd0] sm:$0xff]
  %v107 = vld [vmem:[%s0 + $0xd8] sm:$0xff]
  %v108 = vld [vmem:[%s0 + $0xe0] sm:$0xff]
  %v109 = vld [vmem:[%s0 + $0xe8] sm:$0xff]
  %v110 = vld [vmem:[%s0 + $0xf0] sm:$0xff]
  %v111 = vld [vmem:[%s0 + $0xf8] sm:$0xff]
  %v112 = vld [vmem:[%s1] sm:$0xf]
  %v113 = vld [vmem:[%s1 + $0x4] sm:$0xf]
  %v114 = vld [vmem:[%s1 + $0x8] sm:$0xf]
  %v115 = vld [vmem:[%s1 + $0xc] sm:$0xf]
  %v116 = vld [vmem:[%s1 + $0x10] sm:$0xf]
  %v117 = vld [vmem:[%s1 + $0x14] sm:$0xf]
  %v118 = vld [vmem:[%s1 + $0x18] sm:$0xf]
  %v119 = vld [vmem:[%s1 + $0x1c] sm:$0xf]
  %v120 = vld [vmem:[%s1 + $0x20] sm:$0xf]
  %v121 = vld [vmem:[%s1 + $0x24] sm:$0xf]
  %v122 = vld [vmem:[%s1 + $0x28] sm:$0xf]
  %v123 = vld [vmem:[%s1 + $0x2c] sm:$0xf]
  %v124 = vld [vmem:[%s1 + $0x30] sm:$0xf]
  %v125 = vld [vmem:[%s1 + $0x34] sm:$0xf]
  %v126 = vld [vmem:[%s1 + $0x38] sm:$0xf]
  %v127 = vld [vmem:[%s1 + $0x3c] sm:$0xf]
  %v128 = vld [vmem:[%s1 + $0x40] sm:$0xf]
  %v129 = vld [vmem:[%s1 + $0x44] sm:$0xf]
  %v130 = vld [vmem:[%s1 + $0x48] sm:$0xf]
  %v131 = vld [vmem:[%s1 + $0x4c] sm:$0xf]
  %v132 = vld [vmem:[%s1 + $0x50] sm:$0xf]
  %v133 = vld [vmem:[%s1 + $0x54] sm:$0xf]
  %v134 = vld [vmem:[%s1 + $0x58] sm:$0xf]
  %v135 = vld [vmem:[%s1 + $0x5c] sm:$0xf]
  %v136 = vld [vmem:[%s1 + $0x60] sm:$0xf]
  %v137 = vld [vmem:[%s1 + $0x64] sm:$0xf]
  %v138 = vld [vmem:[%s1 + $0x68] sm:$0xf]
  %v139 = vld [vmem:[%s1 + $0x6c] sm:$0xf]
  %v140 = vld [vmem:[%s1 + $0x70] sm:$0xf]
  %v141 = vld [vmem:[%s1 + $0x74] sm:$0xf]
  %v142 = vld [vmem:[%s1 + $0x78] sm:$0xf]
  %v143 = vld [vmem:[%s1 + $0x7c] sm:$0xf]
  %v176 = vunpack.c.l.b16 %v80
  %v177 = vunpack.c.h.b16 %v80
  %v178 = vunpack.c.l.b16 %v81
  %v179 = vunpack.c.h.b16 %v81
  %v180 = vunpack.c.l.b16 %v82
  %v181 = vunpack.c.h.b16 %v82
  %v182 = vunpack.c.l.b16 %v83
  %v183 = vunpack.c.h.b16 %v83
  %v184 = vunpack.c.l.b16 %v84
  %v185 = vunpack.c.h.b16 %v84
  %v186 = vunpack.c.l.b16 %v85
  %v187 = vunpack.c.h.b16 %v85
  %v188 = vunpack.c.l.b16 %v86
  %v189 = vunpack.c.h.b16 %v86
  %v190 = vunpack.c.l.b16 %v87
  %v191 = vunpack.c.h.b16 %v87
  %v192 = vunpack.c.l.b16 %v88
  %v193 = vunpack.c.h.b16 %v88
  %v194 = vunpack.c.l.b16 %v89
  %v195 = vunpack.c.h.b16 %v89
  %v196 = vunpack.c.l.b16 %v90
  %v197 = vunpack.c.h.b16 %v90
  %v198 = vunpack.c.l.b16 %v91
  %v199 = vunpack.c.h.b16 %v91
  %v200 = vunpack.c.l.b16 %v92
  %v201 = vunpack.c.h.b16 %v92
  %v202 = vunpack.c.l.b16 %v93
  %v203 = vunpack.c.h.b16 %v93
  %v204 = vunpack.c.l.b16 %v94
  %v205 = vunpack.c.h.b16 %v94
  %v206 = vunpack.c.l.b16 %v95
  %v207 = vunpack.c.h.b16 %v95
  %v208 = vunpack.c.l.b16 %v96
  %v209 = vunpack.c.h.b16 %v96
  %v210 = vunpack.c.l.b16 %v97
  %v211 = vunpack.c.h.b16 %v97
  %v212 = vunpack.c.l.b16 %v98
  %v213 = vunpack.c.h.b16 %v98
  %v214 = vunpack.c.l.b16 %v99
  %v215 = vunpack.c.h.b16 %v99
  %v216 = vunpack.c.l.b16 %v100
  %v217 = vunpack.c.h.b16 %v100
  %v218 = vunpack.c.l.b16 %v101
  %v219 = vunpack.c.h.b16 %v101
  %v220 = vunpack.c.l.b16 %v102
  %v221 = vunpack.c.h.b16 %v102
  %v222 = vunpack.c.l.b16 %v103
  %v223 = vunpack.c.h.b16 %v103
  %v224 = vunpack.c.l.b16 %v104
  %v225 = vunpack.c.h.b16 %v104
  %v226 = vunpack.c.l.b16 %v105
  %v227 = vunpack.c.h.b16 %v105
  %v228 = vunpack.c.l.b16 %v106
  %v229 = vunpack.c.h.b16 %v106
  %v230 = vunpack.c.l.b16 %v107
  %v231 = vunpack.c.h.b16 %v107
  %v232 = vunpack.c.l.b16 %v108
  %v233 = vunpack.c.h.b16 %v108
  %v234 = vunpack.c.l.b16 %v109
  %v235 = vunpack.c.h.b16 %v109
  %v236 = vunpack.c.l.b16 %v110
  %v237 = vunpack.c.h.b16 %v110
  %v238 = vunpack.c.l.b16 %v111
  %v239 = vunpack.c.h.b16 %v111
  %v240 = vpack.c.b16 %v178, %v176
  %v241 = vpack.c.b16 %v179, %v177
  %v242 = vpack.c.b16 %v182, %v180
  %v243 = vpack.c.b16 %v183, %v181
  %v244 = vpack.c.b16 %v186, %v184
  %v245 = vpack.c.b16 %v187, %v185
  %v246 = vpack.c.b16 %v190, %v188
  %v247 = vpack.c.b16 %v191, %v189
  %v248 = vpack.c.b16 %v194, %v192
  %v249 = vpack.c.b16 %v195, %v193
  %v250 = vpack.c.b16 %v198, %v196
  %v251 = vpack.c.b16 %v199, %v197
  %v252 = vpack.c.b16 %v202, %v200
  %v253 = vpack.c.b16 %v203, %v201
  %v254 = vpack.c.b16 %v206, %v204
  %v255 = vpack.c.b16 %v207, %v205
  %v256 = vpack.c.b16 %v210, %v208
  %v257 = vpack.c.b16 %v211, %v209
  %v258 = vpack.c.b16 %v214, %v212
  %v259 = vpack.c.b16 %v215, %v213
  %v260 = vpack.c.b16 %v218, %v216
  %v261 = vpack.c.b16 %v219, %v217
  %v262 = vpack.c.b16 %v222, %v220
  %v263 = vpack.c.b16 %v223, %v221
  %v264 = vpack.c.b16 %v226, %v224
  %v265 = vpack.c.b16 %v227, %v225
  %v266 = vpack.c.b16 %v230, %v228
  %v267 = vpack.c.b16 %v231, %v229
  %v268 = vpack.c.b16 %v234, %v232
  %v269 = vpack.c.b16 %v235, %v233
  %v270 = vpack.c.b16 %v238, %v236
  %v271 = vpack.c.b16 %v239, %v237
  %v336 = vunpack.c.l.b16 %v112
  %v337 = vunpack.c.l.b16 %v113
  %v338 = vunpack.c.l.b16 %v114
  %v339 = vunpack.c.l.b16 %v115
  %v340 = vunpack.c.l.b16 %v116
  %v341 = vunpack.c.l.b16 %v117
  %v342 = vunpack.c.l.b16 %v118
  %v343 = vunpack.c.l.b16 %v119
  %v344 = vunpack.c.l.b16 %v120
  %v345 = vunpack.c.l.b16 %v121
  %v346 = vunpack.c.l.b16 %v122
  %v347 = vunpack.c.l.b16 %v123
  %v348 = vunpack.c.l.b16 %v124
  %v349 = vunpack.c.l.b16 %v125
  %v350 = vunpack.c.l.b16 %v126
  %v351 = vunpack.c.l.b16 %v127
  %v352 = vunpack.c.l.b16 %v128
  %v353 = vunpack.c.l.b16 %v129
  %v354 = vunpack.c.l.b16 %v130
  %v355 = vunpack.c.l.b16 %v131
  %v356 = vunpack.c.l.b16 %v132
  %v357 = vunpack.c.l.b16 %v133
  %v358 = vunpack.c.l.b16 %v134
  %v359 = vunpack.c.l.b16 %v135
  %v360 = vunpack.c.l.b16 %v136
  %v361 = vunpack.c.l.b16 %v137
  %v362 = vunpack.c.l.b16 %v138
  %v363 = vunpack.c.l.b16 %v139
  %v364 = vunpack.c.l.b16 %v140
  %v365 = vunpack.c.l.b16 %v141
  %v366 = vunpack.c.l.b16 %v142
  %v367 = vunpack.c.l.b16 %v143
  %v368 = vpack.c.b16 %v337, %v336
  %v369 = vpack.c.b16 %v339, %v338
  %v370 = vpack.c.b16 %v341, %v340
  %v371 = vpack.c.b16 %v343, %v342
  %v372 = vpack.c.b16 %v345, %v344
  %v373 = vpack.c.b16 %v347, %v346
  %v374 = vpack.c.b16 %v349, %v348
  %v375 = vpack.c.b16 %v351, %v350
  %v376 = vpack.c.b16 %v353, %v352
  %v377 = vpack.c.b16 %v355, %v354
  %v378 = vpack.c.b16 %v357, %v356
  %v379 = vpack.c.b16 %v359, %v358
  %v380 = vpack.c.b16 %v361, %v360
  %v381 = vpack.c.b16 %v363, %v362
  %v382 = vpack.c.b16 %v365, %v364
  %v383 = vpack.c.b16 %v367, %v366
  %400 = vmatprep.subr.bf16.mxu0 0
  %401 = vmatpush1.bf16.msra.mxu0 %v375
  %402 = vmatprep.subr.bf16.mxu0 0
  %403 = vmatpush1.bf16.msra.mxu0 %v374
  %404 = vmatprep.subr.bf16.mxu0 0
  %405 = vmatpush1.bf16.msra.mxu0 %v373
  %406 = vmatprep.subr.bf16.mxu0 0
  %407 = vmatpush1.bf16.msra.mxu0 %v372
  %408 = vmatprep.subr.bf16.mxu0 0
  %409 = vmatpush1.bf16.msra.mxu0 %v371
  %410 = vmatprep.subr.bf16.mxu0 0
  %411 = vmatpush1.bf16.msra.mxu0 %v370
  %412 = vmatprep.subr.bf16.mxu0 0
  %413 = vmatpush1.bf16.msra.mxu0 %v369
  %414 = vmatprep.subr.bf16.mxu0 0
  %415 = vmatpush1.bf16.msra.mxu0 %v368
  %416 = vmatprep.subr.bf16.mxu0 0
  %417 = vmatpush2.bf16.msra.mxu0 %v383
  %418 = vmatprep.subr.bf16.mxu0 0
  %419 = vmatpush2.bf16.msra.mxu0 %v382
  %420 = vmatprep.subr.bf16.mxu0 0
  %421 = vmatpush2.bf16.msra.mxu0 %v381
  %422 = vmatprep.subr.bf16.mxu0 0
  %423 = vmatpush2.bf16.msra.mxu0 %v380
  %424 = vmatprep.subr.bf16.mxu0 0
  %425 = vmatpush2.bf16.msra.mxu0 %v379
  %426 = vmatprep.subr.bf16.mxu0 0
  %427 = vmatpush2.bf16.msra.mxu0 %v378
  %428 = vmatprep.subr.bf16.mxu0 0
  %429 = vmatpush2.bf16.msra.mxu0 %v377
  %430 = vmatprep.subr.bf16.mxu0 0
  %431 = vmatpush2.bf16.msra.mxu0 %v376
  %432 = vmatprep.mubr.bf16.mxu0 %v241
  %433 = vmatmul.mubr.bf16.gmra.mxu0 %v240
  %v434 = vpop.f32.mrf.mxu0
  %v435 = vadd.f32 0.0, %v434
  %v436 = vpop.f32.mrf.mxu0
  %v437 = vpop.f32.mrf.mxu0
  %v438 = vadd.f32 0.0, %v437
  %v439 = vpop.f32.mrf.mxu0
  %440 = vmatprep.mubr.bf16.mxu0 %v243
  %441 = vmatmul.mubr.bf16.gmra.mxu0 %v242
  %v442 = vpop.f32.mrf.mxu0
  %v443 = vadd.f32 0.0, %v442
  %v444 = vpop.f32.mrf.mxu0
  %v445 = vpop.f32.mrf.mxu0
  %v446 = vadd.f32 0.0, %v445
  %v447 = vpop.f32.mrf.mxu0
  %448 = vmatprep.mubr.bf16.mxu0 %v245
  %449 = vmatmul.mubr.bf16.gmra.mxu0 %v244
  %v450 = vpop.f32.mrf.mxu0
  %v451 = vadd.f32 0.0, %v450
  %v452 = vpop.f32.mrf.mxu0
  %v453 = vpop.f32.mrf.mxu0
  %v454 = vadd.f32 0.0, %v453
  %v455 = vpop.f32.mrf.mxu0
  %456 = vmatprep.mubr.bf16.mxu0 %v247
  %457 = vmatmul.mubr.bf16.gmra.mxu0 %v246
  %v458 = vpop.f32.mrf.mxu0
  %v459 = vadd.f32 0.0, %v458
  %v460 = vpop.f32.mrf.mxu0
  %v461 = vpop.f32.mrf.mxu0
  %v462 = vadd.f32 0.0, %v461
  %v463 = vpop.f32.mrf.mxu0
  %464 = vmatprep.mubr.bf16.mxu0 %v249
  %465 = vmatmul.mubr.bf16.gmra.mxu0 %v248
  %v466 = vpop.f32.mrf.mxu0
  %v467 = vadd.f32 0.0, %v466
  %v468 = vpop.f32.mrf.mxu0
  %v469 = vpop.f32.mrf.mxu0
  %v470 = vadd.f32 0.0, %v469
  %v471 = vpop.f32.mrf.mxu0
  %472 = vmatprep.mubr.bf16.mxu0 %v251
  %473 = vmatmul.mubr.bf16.gmra.mxu0 %v250
  %v474 = vpop.f32.mrf.mxu0
  %v475 = vadd.f32 0.0, %v474
  %v476 = vpop.f32.mrf.mxu0
  %v477 = vpop.f32.mrf.mxu0
  %v478 = vadd.f32 0.0, %v477
  %v479 = vpop.f32.mrf.mxu0
  %480 = vmatprep.mubr.bf16.mxu0 %v253
  %481 = vmatmul.mubr.bf16.gmra.mxu0 %v252
  %v482 = vpop.f32.mrf.mxu0
  %v483 = vadd.f32 0.0, %v482
  %v484 = vpop.f32.mrf.mxu0
  %v485 = vpop.f32.mrf.mxu0
  %v486 = vadd.f32 0.0, %v485
  %v487 = vpop.f32.mrf.mxu0
  %488 = vmatprep.mubr.bf16.mxu0 %v255
  %489 = vmatmul.mubr.bf16.gmra.mxu0 %v254
  %v490 = vpop.f32.mrf.mxu0
  %v491 = vadd.f32 0.0, %v490
  %v492 = vpop.f32.mrf.mxu0
  %v493 = vpop.f32.mrf.mxu0
  %v494 = vadd.f32 0.0, %v493
  %v495 = vpop.f32.mrf.mxu0
  %496 = vmatprep.mubr.bf16.mxu0 %v257
  %497 = vmatmul.mubr.bf16.gmra.mxu0 %v256
  %v498 = vpop.f32.mrf.mxu0
  %v499 = vadd.f32 0.0, %v498
  %v500 = vpop.f32.mrf.mxu0
  %v501 = vpop.f32.mrf.mxu0
  %v502 = vadd.f32 0.0, %v501
  %v503 = vpop.f32.mrf.mxu0
  %504 = vmatprep.mubr.bf16.mxu0 %v259
  %505 = vmatmul.mubr.bf16.gmra.mxu0 %v258
  %v506 = vpop.f32.mrf.mxu0
  %v507 = vadd.f32 0.0, %v506
  %v508 = vpop.f32.mrf.mxu0
  %v509 = vpop.f32.mrf.mxu0
  %v510 = vadd.f32 0.0, %v509
  %v511 = vpop.f32.mrf.mxu0
  %512 = vmatprep.mubr.bf16.mxu0 %v261
  %513 = vmatmul.mubr.bf16.gmra.mxu0 %v260
  %v514 = vpop.f32.mrf.mxu0
  %v515 = vadd.f32 0.0, %v514
  %v516 = vpop.f32.mrf.mxu0
  %v517 = vpop.f32.mrf.mxu0
  %v518 = vadd.f32 0.0, %v517
  %v519 = vpop.f32.mrf.mxu0
  %520 = vmatprep.mubr.bf16.mxu0 %v263
  %521 = vmatmul.mubr.bf16.gmra.mxu0 %v262
  %v522 = vpop.f32.mrf.mxu0
  %v523 = vadd.f32 0.0, %v522
  %v524 = vpop.f32.mrf.mxu0
  %v525 = vpop.f32.mrf.mxu0
  %v526 = vadd.f32 0.0, %v525
  %v527 = vpop.f32.mrf.mxu0
  %528 = vmatprep.mubr.bf16.mxu0 %v265
  %529 = vmatmul.mubr.bf16.gmra.mxu0 %v264
  %v530 = vpop.f32.mrf.mxu0
  %v531 = vadd.f32 0.0, %v530
  %v532 = vpop.f32.mrf.mxu0
  %v533 = vpop.f32.mrf.mxu0
  %v534 = vadd.f32 0.0, %v533
  %v535 = vpop.f32.mrf.mxu0
  %536 = vmatprep.mubr.bf16.mxu0 %v267
  %537 = vmatmul.mubr.bf16.gmra.mxu0 %v266
  %v538 = vpop.f32.mrf.mxu0
  %v539 = vadd.f32 0.0, %v538
  %v540 = vpop.f32.mrf.mxu0
  %v541 = vpop.f32.mrf.mxu0
  %v542 = vadd.f32 0.0, %v541
  %v543 = vpop.f32.mrf.mxu0
  %544 = vmatprep.mubr.bf16.mxu0 %v269
  %545 = vmatmul.mubr.bf16.gmra.mxu0 %v268
  %v546 = vpop.f32.mrf.mxu0
  %v547 = vadd.f32 0.0, %v546
  %v548 = vpop.f32.mrf.mxu0
  %v549 = vpop.f32.mrf.mxu0
  %v550 = vadd.f32 0.0, %v549
  %v551 = vpop.f32.mrf.mxu0
  %552 = vmatprep.mubr.bf16.mxu0 %v271
  %553 = vmatmul.mubr.bf16.gmra.mxu0 %v270
  %v554 = vpop.f32.mrf.mxu0
  %v555 = vadd.f32 0.0, %v554
  %v556 = vpop.f32.mrf.mxu0
  %v557 = vpop.f32.mrf.mxu0
  %v558 = vadd.f32 0.0, %v557
  %v559 = vpop.f32.mrf.mxu0
  %560 = vdwg.mxu0
  %v561 = vadd.f32 %v48, %v435
  %v562 = vadd.f32 %v49, %v438
  %v563 = vadd.f32 %v50, %v443
  %v564 = vadd.f32 %v51, %v446
  %v565 = vadd.f32 %v52, %v451
  %v566 = vadd.f32 %v53, %v454
  %v567 = vadd.f32 %v54, %v459
  %v568 = vadd.f32 %v55, %v462
  %v569 = vadd.f32 %v56, %v467
  %v570 = vadd.f32 %v57, %v470
  %v571 = vadd.f32 %v58, %v475
  %v572 = vadd.f32 %v59, %v478
  %v573 = vadd.f32 %v60, %v483
  %v574 = vadd.f32 %v61, %v486
  %v575 = vadd.f32 %v62, %v491
  %v576 = vadd.f32 %v63, %v494
  %v577 = vadd.f32 %v64, %v499
  %v578 = vadd.f32 %v65, %v502
  %v579 = vadd.f32 %v66, %v507
  %v580 = vadd.f32 %v67, %v510
  %v581 = vadd.f32 %v68, %v515
  %v582 = vadd.f32 %v69, %v518
  %v583 = vadd.f32 %v70, %v523
  %v584 = vadd.f32 %v71, %v526
  %v585 = vadd.f32 %v72, %v531
  %v586 = vadd.f32 %v73, %v534
  %v587 = vadd.f32 %v74, %v539
  %v588 = vadd.f32 %v75, %v542
  %v589 = vadd.f32 %v76, %v547
  %v590 = vadd.f32 %v77, %v550
  %v591 = vadd.f32 %v78, %v555
  %v592 = vadd.f32 %v79, %v558
  %593 = vst [vmem:[#allocation2] sm:$0xff] %v561
  %594 = vst [vmem:[#allocation2 + $0x8] sm:$0xff] %v562
  %595 = vst [vmem:[#allocation2 + $0x10] sm:$0xff] %v563
  %596 = vst [vmem:[#allocation2 + $0x18] sm:$0xff] %v564
  %597 = vst [vmem:[#allocation2 + $0x20] sm:$0xff] %v565
  %598 = vst [vmem:[#allocation2 + $0x28] sm:$0xff] %v566
  %599 = vst [vmem:[#allocation2 + $0x30] sm:$0xff] %v567
  %600 = vst [vmem:[#allocation2 + $0x38] sm:$0xff] %v568
  %601 = vst [vmem:[#allocation2 + $0x40] sm:$0xff] %v569
  %602 = vst [vmem:[#allocation2 + $0x48] sm:$0xff] %v570
  %603 = vst [vmem:[#allocation2 + $0x50] sm:$0xff] %v571
  %604 = vst [vmem:[#allocation2 + $0x58] sm:$0xff] %v572
  %605 = vst [vmem:[#allocation2 + $0x60] sm:$0xff] %v573
  %606 = vst [vmem:[#allocation2 + $0x68] sm:$0xff] %v574
  %607 = vst [vmem:[#allocation2 + $0x70] sm:$0xff] %v575
  %608 = vst [vmem:[#allocation2 + $0x78] sm:$0xff] %v576
  %609 = vst [vmem:[#allocation2 + $0x80] sm:$0xff] %v577
  %610 = vst [vmem:[#allocation2 + $0x88] sm:$0xff] %v578
  %611 = vst [vmem:[#allocation2 + $0x90] sm:$0xff] %v579
  %612 = vst [vmem:[#allocation2 + $0x98] sm:$0xff] %v580
  %613 = vst [vmem:[#allocation2 + $0xa0] sm:$0xff] %v581
  %614 = vst [vmem:[#allocation2 + $0xa8] sm:$0xff] %v582
  %615 = vst [vmem:[#allocation2 + $0xb0] sm:$0xff] %v583
  %616 = vst [vmem:[#allocation2 + $0xb8] sm:$0xff] %v584
  %617 = vst [vmem:[#allocation2 + $0xc0] sm:$0xff] %v585
  %618 = vst [vmem:[#allocation2 + $0xc8] sm:$0xff] %v586
  %619 = vst [vmem:[#allocation2 + $0xd0] sm:$0xff] %v587
  %620 = vst [vmem:[#allocation2 + $0xd8] sm:$0xff] %v588
  %621 = vst [vmem:[#allocation2 + $0xe0] sm:$0xff] %v589
  %622 = vst [vmem:[#allocation2 + $0xe8] sm:$0xff] %v590
  %623 = vst [vmem:[#allocation2 + $0xf0] sm:$0xff] %v591
  %624 = vst [vmem:[#allocation2 + $0xf8] sm:$0xff] %v592
  // Predicated region
  $region14: #{gcn_forward.3} parent=0 // pred_check
    %p625 = pneg %p12
  $region15: #{gcn_forward.3} parent=0 // pred_check_branch
    %627 = sbr.rel (%p625) target = $region17
  $region16: #{gcn_forward.3} parent=0 // pred_region
    %v628 = vld [vmem:[#allocation2] sm:$0xff]
    %v629 = vld [vmem:[#allocation2 + $0x8] sm:$0xff]
    %v630 = vld [vmem:[#allocation2 + $0x10] sm:$0xff]
    %v631 = vld [vmem:[#allocation2 + $0x18] sm:$0xff]
    %v632 = vld [vmem:[#allocation2 + $0x20] sm:$0xff]
    %v633 = vld [vmem:[#allocation2 + $0x28] sm:$0xff]
    %v634 = vld [vmem:[#allocation2 + $0x30] sm:$0xff]
    %v635 = vld [vmem:[#allocation2 + $0x38] sm:$0xff]
    %v636 = vld [vmem:[#allocation2 + $0x40] sm:$0xff]
    %v637 = vld [vmem:[#allocation2 + $0x48] sm:$0xff]
    %v638 = vld [vmem:[#allocation2 + $0x50] sm:$0xff]
    %v639 = vld [vmem:[#allocation2 + $0x58] sm:$0xff]
    %v640 = vld [vmem:[#allocation2 + $0x60] sm:$0xff]
    %v641 = vld [vmem:[#allocation2 + $0x68] sm:$0xff]
    %v642 = vld [vmem:[#allocation2 + $0x70] sm:$0xff]
    %v643 = vld [vmem:[#allocation2 + $0x78] sm:$0xff]
    %v644 = vld [vmem:[#allocation2 + $0x80] sm:$0xff]
    %v645 = vld [vmem:[#allocation2 + $0x88] sm:$0xff]
    %v646 = vld [vmem:[#allocation2 + $0x90] sm:$0xff]
    %v647 = vld [vmem:[#allocation2 + $0x98] sm:$0xff]
    %v648 = vld [vmem:[#allocation2 + $0xa0] sm:$0xff]
    %v649 = vld [vmem:[#allocation2 + $0xa8] sm:$0xff]
    %v650 = vld [vmem:[#allocation2 + $0xb0] sm:$0xff]
    %v651 = vld [vmem:[#allocation2 + $0xb8] sm:$0xff]
    %v652 = vld [vmem:[#allocation2 + $0xc0] sm:$0xff]
    %v653 = vld [vmem:[#allocation2 + $0xc8] sm:$0xff]
    %v654 = vld [vmem:[#allocation2 + $0xd0] sm:$0xff]
    %v655 = vld [vmem:[#allocation2 + $0xd8] sm:$0xff]
    %v656 = vld [vmem:[#allocation2 + $0xe0] sm:$0xff]
    %v657 = vld [vmem:[#allocation2 + $0xe8] sm:$0xff]
    %v658 = vld [vmem:[#allocation2 + $0xf0] sm:$0xff]
    %v659 = vld [vmem:[#allocation2 + $0xf8] sm:$0xff]
    %660 = vst [vmem:[%s2] sm:$0xff] %v628
    %661 = vst [vmem:[%s2 + $0x8] sm:$0xff] %v629
    %662 = vst [vmem:[%s2 + $0x10] sm:$0xff] %v630
    %663 = vst [vmem:[%s2 + $0x18] sm:$0xff] %v631
    %664 = vst [vmem:[%s2 + $0x20] sm:$0xff] %v632
    %665 = vst [vmem:[%s2 + $0x28] sm:$0xff] %v633
    %666 = vst [vmem:[%s2 + $0x30] sm:$0xff] %v634
    %667 = vst [vmem:[%s2 + $0x38] sm:$0xff] %v635
    %668 = vst [vmem:[%s2 + $0x40] sm:$0xff] %v636
    %669 = vst [vmem:[%s2 + $0x48] sm:$0xff] %v637
    %670 = vst [vmem:[%s2 + $0x50] sm:$0xff] %v638
    %671 = vst [vmem:[%s2 + $0x58] sm:$0xff] %v639
    %672 = vst [vmem:[%s2 + $0x60] sm:$0xff] %v640
    %673 = vst [vmem:[%s2 + $0x68] sm:$0xff] %v641
    %674 = vst [vmem:[%s2 + $0x70] sm:$0xff] %v642
    %675 = vst [vmem:[%s2 + $0x78] sm:$0xff] %v643
    %676 = vst [vmem:[%s2 + $0x80] sm:$0xff] %v644
    %677 = vst [vmem:[%s2 + $0x88] sm:$0xff] %v645
    %678 = vst [vmem:[%s2 + $0x90] sm:$0xff] %v646
    %679 = vst [vmem:[%s2 + $0x98] sm:$0xff] %v647
    %680 = vst [vmem:[%s2 + $0xa0] sm:$0xff] %v648
    %681 = vst [vmem:[%s2 + $0xa8] sm:$0xff] %v649
    %682 = vst [vmem:[%s2 + $0xb0] sm:$0xff] %v650
    %683 = vst [vmem:[%s2 + $0xb8] sm:$0xff] %v651
    %684 = vst [vmem:[%s2 + $0xc0] sm:$0xff] %v652
    %685 = vst [vmem:[%s2 + $0xc8] sm:$0xff] %v653
    %686 = vst [vmem:[%s2 + $0xd0] sm:$0xff] %v654
    %687 = vst [vmem:[%s2 + $0xd8] sm:$0xff] %v655
    %688 = vst [vmem:[%s2 + $0xe0] sm:$0xff] %v656
    %689 = vst [vmem:[%s2 + $0xe8] sm:$0xff] %v657
    %690 = vst [vmem:[%s2 + $0xf0] sm:$0xff] %v658
    %691 = vst [vmem:[%s2 + $0xf8] sm:$0xff] %v659
  $region17: #{gcn_forward.3} parent=0 // pred_fallthru
    _
  // Predicated region
  $region18: #{gcn_forward.3} parent=0 // pred_check
    _
  $region19: #{gcn_forward.3} parent=0 // pred_check_branch
    %693 = sbr.rel (0) target = $region21
  $region20: #{gcn_forward.3} parent=0 // pred_region
    _
  $region21: #{gcn_forward.3} parent=0 // pred_fallthru
    _
  // Predicated region
  $region22: #{gcn_forward.3} parent=0 // pred_check
    _
  $region23: #{gcn_forward.3} parent=0 // pred_check_branch
    %695 = sbr.rel (0) target = $region25
  $region24: #{gcn_forward.3} parent=0 // pred_region
    _
  $region25: #{gcn_forward.3} parent=0 // pred_fallthru
    _

// kernel: gcn_forward.2
$region0: #{gcn_forward.2}
  #allocation0 [shape = 'u32[]', space=smem, size = 0x4, offset = 0x4, fixed_abs, tag = 'smem constant byte address 0x4 - core index']
  #allocation1 [shape = 'u32[144,128]{1,0:T(1,128)}', space=vmem, size = 0x12000, scoped, tag = 'internal scratch']
  #allocation2 [shape = 'f32[256,128]{1,0:T(8,128)}', space=vmem, size = 0x20000, scoped, tag = 'scratch operand']
  %s0 = inlined_call_operand.vmem [shape: bf16[256,256], index: 0, kind: input, shape index: {}]
  %s1 = inlined_call_operand.vmem [shape: bf16[256,128], index: 1, kind: input, shape index: {}]
  %s2 = inlined_call_operand.vmem [shape: f32[256,1], index: 2, kind: input, shape index: {}]
  %s3 = inlined_call_operand.vmem [shape: bf16[128,128], index: 3, kind: input, shape index: {}]
  %s4 = inlined_call_operand.vmem [shape: f32[1,128], index: 4, kind: input, shape index: {}]
  %s5 = inlined_call_operand.vmem [shape: bf16[128,128], index: 5, kind: input, shape index: {}]
  %s6 = inlined_call_operand.vmem [shape: f32[1,128], index: 6, kind: input, shape index: {}]
  %s7 = inlined_call_operand.vmem [shape: bf16[256,128], index: 7, kind: output, shape index: {}]
  %s8 = sld [smem:[#allocation0]]
  $region46: #{gcn_forward.2} parent=0
    _
  %s10 = ssub.s32 1, %s8
  %s11 = scalar_select 0, %s10, %s8
  // Predicated region
  $region2: #{gcn_forward.2} parent=0 // pred_check
    _
  $region3: #{gcn_forward.2} parent=0 // pred_check_branch
    %13 = sbr.rel (0) target = $region5
  $region4: #{gcn_forward.2} parent=0 // pred_region
    _
  $region5: #{gcn_forward.2} parent=0 // pred_fallthru
    _
  // Predicated region
  $region6: #{gcn_forward.2} parent=0 // pred_check
    _
  $region7: #{gcn_forward.2} parent=0 // pred_check_branch
    %15 = sbr.rel (0) target = $region9
  $region8: #{gcn_forward.2} parent=0 // pred_region
    _
  $region9: #{gcn_forward.2} parent=0 // pred_fallthru
    _
  // Predicated region
  $region10: #{gcn_forward.2} parent=0 // pred_check
    _
  $region11: #{gcn_forward.2} parent=0 // pred_check_branch
    %17 = sbr.rel (0) target = $region13
  $region12: #{gcn_forward.2} parent=0 // pred_region
    _
  $region13: #{gcn_forward.2} parent=0 // pred_fallthru
    _
  // Predicated region
  $region14: #{gcn_forward.2} parent=0 // pred_check
    _
  $region15: #{gcn_forward.2} parent=0 // pred_check_branch
    %19 = sbr.rel (0) target = $region17
  $region16: #{gcn_forward.2} parent=0 // pred_region
    _
  $region17: #{gcn_forward.2} parent=0 // pred_fallthru
    _
  // Predicated region
  $region18: #{gcn_forward.2} parent=0 // pred_check
    _
  $region19: #{gcn_forward.2} parent=0 // pred_check_branch
    %21 = sbr.rel (0) target = $region21
  $region20: #{gcn_forward.2} parent=0 // pred_region
    _
  $region21: #{gcn_forward.2} parent=0 // pred_fallthru
    _
  // Predicated region
  $region22: #{gcn_forward.2} parent=0 // pred_check
    _
  $region23: #{gcn_forward.2} parent=0 // pred_check_branch
    %23 = sbr.rel (0) target = $region25
  $region24: #{gcn_forward.2} parent=0 // pred_region
    _
  $region25: #{gcn_forward.2} parent=0 // pred_fallthru
    _
  // Predicated region
  $region26: #{gcn_forward.2} parent=0 // pred_check
    _
  $region27: #{gcn_forward.2} parent=0 // pred_check_branch
    %25 = sbr.rel (0) target = $region29
  $region28: #{gcn_forward.2} parent=0 // pred_region
    _
  $region29: #{gcn_forward.2} parent=0 // pred_fallthru
    _
  %p27 = scmp.eq.s32.totalorder 0, 0
  // Predicated region
  $region30: #{gcn_forward.2} parent=0 // pred_check
    %p28 = pneg %p27
  $region31: #{gcn_forward.2} parent=0 // pred_check_branch
    %30 = sbr.rel (%p28) target = $region33
  $region32: #{gcn_forward.2} parent=0 // pred_region
    %31 = vst [vmem:[#allocation2] sm:$0xff] 0.0
    %32 = vst [vmem:[#allocation2 + $0x8] sm:$0xff] 0.0
    %33 = vst [vmem:[#allocation2 + $0x10] sm:$0xff] 0.0
    %34 = vst [vmem:[#allocation2 + $0x18] sm:$0xff] 0.0
    %35 = vst [vmem:[#allocation2 + $0x20] sm:$0xff] 0.0
    %36 = vst [vmem:[#allocation2 + $0x28] sm:$0xff] 0.0
    %37 = vst [vmem:[#allocation2 + $0x30] sm:$0xff] 0.0
    %38 = vst [vmem:[#allocation2 + $0x38] sm:$0xff] 0.0
    %39 = vst [vmem:[#allocation2 + $0x40] sm:$0xff] 0.0
    %40 = vst [vmem:[#allocation2 + $0x48] sm:$0xff] 0.0
    %41 = vst [vmem:[#allocation2 + $0x50] sm:$0xff] 0.0
    %42 = vst [vmem:[#allocation2 + $0x58] sm:$0xff] 0.0
    %43 = vst [vmem:[#allocation2 + $0x60] sm:$0xff] 0.0
    %44 = vst [vmem:[#allocation2 + $0x68] sm:$0xff] 0.0
    %45 = vst [vmem:[#allocation2 + $0x70] sm:$0xff] 0.0
    %46 = vst [vmem:[#allocation2 + $0x78] sm:$0xff] 0.0
    %47 = vst [vmem:[#allocation2 + $0x80] sm:$0xff] 0.0
    %48 = vst [vmem:[#allocation2 + $0x88] sm:$0xff] 0.0
    %49 = vst [vmem:[#allocation2 + $0x90] sm:$0xff] 0.0
    %50 = vst [vmem:[#allocation2 + $0x98] sm:$0xff] 0.0
    %51 = vst [vmem:[#allocation2 + $0xa0] sm:$0xff] 0.0
    %52 = vst [vmem:[#allocation2 + $0xa8] sm:$0xff] 0.0
    %53 = vst [vmem:[#allocation2 + $0xb0] sm:$0xff] 0.0
    %54 = vst [vmem:[#allocation2 + $0xb8] sm:$0xff] 0.0
    %55 = vst [vmem:[#allocation2 + $0xc0] sm:$0xff] 0.0
    %56 = vst [vmem:[#allocation2 + $0xc8] sm:$0xff] 0.0
    %57 = vst [vmem:[#allocation2 + $0xd0] sm:$0xff] 0.0
    %58 = vst [vmem:[#allocation2 + $0xd8] sm:$0xff] 0.0
    %59 = vst [vmem:[#allocation2 + $0xe0] sm:$0xff] 0.0
    %60 = vst [vmem:[#allocation2 + $0xe8] sm:$0xff] 0.0
    %61 = vst [vmem:[#allocation2 + $0xf0] sm:$0xff] 0.0
    %62 = vst [vmem:[#allocation2 + $0xf8] sm:$0xff] 0.0
  $region33: #{gcn_forward.2} parent=0 // pred_fallthru
    _
  %v63 = vld [vmem:[#allocation2] sm:$0xff]
  %v64 = vld [vmem:[#allocation2 + $0x8] sm:$0xff]
  %v65 = vld [vmem:[#allocation2 + $0x10] sm:$0xff]
  %v66 = vld [vmem:[#allocation2 + $0x18] sm:$0xff]
  %v67 = vld [vmem:[#allocation2 + $0x20] sm:$0xff]
  %v68 = vld [vmem:[#allocation2 + $0x28] sm:$0xff]
  %v69 = vld [vmem:[#allocation2 + $0x30] sm:$0xff]
  %v70 = vld [vmem:[#allocation2 + $0x38] sm:$0xff]
  %v71 = vld [vmem:[#allocation2 + $0x40] sm:$0xff]
  %v72 = vld [vmem:[#allocation2 + $0x48] sm:$0xff]
  %v73 = vld [vmem:[#allocation2 + $0x50] sm:$0xff]
  %v74 = vld [vmem:[#allocation2 + $0x58] sm:$0xff]
  %v75 = vld [vmem:[#allocation2 + $0x60] sm:$0xff]
  %v76 = vld [vmem:[#allocation2 + $0x68] sm:$0xff]
  %v77 = vld [vmem:[#allocation2 + $0x70] sm:$0xff]
  %v78 = vld [vmem:[#allocation2 + $0x78] sm:$0xff]
  %v79 = vld [vmem:[#allocation2 + $0x80] sm:$0xff]
  %v80 = vld [vmem:[#allocation2 + $0x88] sm:$0xff]
  %v81 = vld [vmem:[#allocation2 + $0x90] sm:$0xff]
  %v82 = vld [vmem:[#allocation2 + $0x98] sm:$0xff]
  %v83 = vld [vmem:[#allocation2 + $0xa0] sm:$0xff]
  %v84 = vld [vmem:[#allocation2 + $0xa8] sm:$0xff]
  %v85 = vld [vmem:[#allocation2 + $0xb0] sm:$0xff]
  %v86 = vld [vmem:[#allocation2 + $0xb8] sm:$0xff]
  %v87 = vld [vmem:[#allocation2 + $0xc0] sm:$0xff]
  %v88 = vld [vmem:[#allocation2 + $0xc8] sm:$0xff]
  %v89 = vld [vmem:[#allocation2 + $0xd0] sm:$0xff]
  %v90 = vld [vmem:[#allocation2 + $0xd8] sm:$0xff]
  %v91 = vld [vmem:[#allocation2 + $0xe0] sm:$0xff]
  %v92 = vld [vmem:[#allocation2 + $0xe8] sm:$0xff]
  %v93 = vld [vmem:[#allocation2 + $0xf0] sm:$0xff]
  %v94 = vld [vmem:[#allocation2 + $0xf8] sm:$0xff]
  %v95 = vld [vmem:[%s0] sm:$0xff]
  %v96 = vld [vmem:[%s0 + $0x8] sm:$0xff]
  %v97 = vld [vmem:[%s0 + $0x10] sm:$0xff]
  %v98 = vld [vmem:[%s0 + $0x18] sm:$0xff]
  %v99 = vld [vmem:[%s0 + $0x20] sm:$0xff]
  %v100 = vld [vmem:[%s0 + $0x28] sm:$0xff]
  %v101 = vld [vmem:[%s0 + $0x30] sm:$0xff]
  %v102 = vld [vmem:[%s0 + $0x38] sm:$0xff]
  %v103 = vld [vmem:[%s0 + $0x40] sm:$0xff]
  %v104 = vld [vmem:[%s0 + $0x48] sm:$0xff]
  %v105 = vld [vmem:[%s0 + $0x50] sm:$0xff]
  %v106 = vld [vmem:[%s0 + $0x58] sm:$0xff]
  %v107 = vld [vmem:[%s0 + $0x60] sm:$0xff]
  %v108 = vld [vmem:[%s0 + $0x68] sm:$0xff]
  %v109 = vld [vmem:[%s0 + $0x70] sm:$0xff]
  %v110 = vld [vmem:[%s0 + $0x78] sm:$0xff]
  %v111 = vld [vmem:[%s0 + $0x80] sm:$0xff]
  %v112 = vld [vmem:[%s0 + $0x88] sm:$0xff]
  %v113 = vld [vmem:[%s0 + $0x90] sm:$0xff]
  %v114 = vld [vmem:[%s0 + $0x98] sm:$0xff]
  %v115 = vld [vmem:[%s0 + $0xa0] sm:$0xff]
  %v116 = vld [vmem:[%s0 + $0xa8] sm:$0xff]
  %v117 = vld [vmem:[%s0 + $0xb0] sm:$0xff]
  %v118 = vld [vmem:[%s0 + $0xb8] sm:$0xff]
  %v119 = vld [vmem:[%s0 + $0xc0] sm:$0xff]
  %v120 = vld [vmem:[%s0 + $0xc8] sm:$0xff]
  %v121 = vld [vmem:[%s0 + $0xd0] sm:$0xff]
  %v122 = vld [vmem:[%s0 + $0xd8] sm:$0xff]
  %v123 = vld [vmem:[%s0 + $0xe0] sm:$0xff]
  %v124 = vld [vmem:[%s0 + $0xe8] sm:$0xff]
  %v125 = vld [vmem:[%s0 + $0xf0] sm:$0xff]
  %v126 = vld [vmem:[%s0 + $0xf8] sm:$0xff]
  %v127 = vld [vmem:[%s1] sm:$0xf]
  %v128 = vld [vmem:[%s1 + $0x4] sm:$0xf]
  %v129 = vld [vmem:[%s1 + $0x8] sm:$0xf]
  %v130 = vld [vmem:[%s1 + $0xc] sm:$0xf]
  %v131 = vld [vmem:[%s1 + $0x10] sm:$0xf]
  %v132 = vld [vmem:[%s1 + $0x14] sm:$0xf]
  %v133 = vld [vmem:[%s1 + $0x18] sm:$0xf]
  %v134 = vld [vmem:[%s1 + $0x1c] sm:$0xf]
  %v135 = vld [vmem:[%s1 + $0x20] sm:$0xf]
  %v136 = vld [vmem:[%s1 + $0x24] sm:$0xf]
  %v137 = vld [vmem:[%s1 + $0x28] sm:$0xf]
  %v138 = vld [vmem:[%s1 + $0x2c] sm:$0xf]
  %v139 = vld [vmem:[%s1 + $0x30] sm:$0xf]
  %v140 = vld [vmem:[%s1 + $0x34] sm:$0xf]
  %v141 = vld [vmem:[%s1 + $0x38] sm:$0xf]
  %v142 = vld [vmem:[%s1 + $0x3c] sm:$0xf]
  %v143 = vld [vmem:[%s1 + $0x40] sm:$0xf]
  %v144 = vld [vmem:[%s1 + $0x44] sm:$0xf]
  %v145 = vld [vmem:[%s1 + $0x48] sm:$0xf]
  %v146 = vld [vmem:[%s1 + $0x4c] sm:$0xf]
  %v147 = vld [vmem:[%s1 + $0x50] sm:$0xf]
  %v148 = vld [vmem:[%s1 + $0x54] sm:$0xf]
  %v149 = vld [vmem:[%s1 + $0x58] sm:$0xf]
  %v150 = vld [vmem:[%s1 + $0x5c] sm:$0xf]
  %v151 = vld [vmem:[%s1 + $0x60] sm:$0xf]
  %v152 = vld [vmem:[%s1 + $0x64] sm:$0xf]
  %v153 = vld [vmem:[%s1 + $0x68] sm:$0xf]
  %v154 = vld [vmem:[%s1 + $0x6c] sm:$0xf]
  %v155 = vld [vmem:[%s1 + $0x70] sm:$0xf]
  %v156 = vld [vmem:[%s1 + $0x74] sm:$0xf]
  %v157 = vld [vmem:[%s1 + $0x78] sm:$0xf]
  %v158 = vld [vmem:[%s1 + $0x7c] sm:$0xf]
  %v191 = vunpack.c.l.b16 %v95
  %v192 = vunpack.c.h.b16 %v95
  %v193 = vunpack.c.l.b16 %v96
  %v194 = vunpack.c.h.b16 %v96
  %v195 = vunpack.c.l.b16 %v97
  %v196 = vunpack.c.h.b16 %v97
  %v197 = vunpack.c.l.b16 %v98
  %v198 = vunpack.c.h.b16 %v98
  %v199 = vunpack.c.l.b16 %v99
  %v200 = vunpack.c.h.b16 %v99
  %v201 = vunpack.c.l.b16 %v100
  %v202 = vunpack.c.h.b16 %v100
  %v203 = vunpack.c.l.b16 %v101
  %v204 = vunpack.c.h.b16 %v101
  %v205 = vunpack.c.l.b16 %v102
  %v206 = vunpack.c.h.b16 %v102
  %v207 = vunpack.c.l.b16 %v103
  %v208 = vunpack.c.h.b16 %v103
  %v209 = vunpack.c.l.b16 %v104
  %v210 = vunpack.c.h.b16 %v104
  %v211 = vunpack.c.l.b16 %v105
  %v212 = vunpack.c.h.b16 %v105
  %v213 = vunpack.c.l.b16 %v106
  %v214 = vunpack.c.h.b16 %v106
  %v215 = vunpack.c.l.b16 %v107
  %v216 = vunpack.c.h.b16 %v107
  %v217 = vunpack.c.l.b16 %v108
  %v218 = vunpack.c.h.b16 %v108
  %v219 = vunpack.c.l.b16 %v109
  %v220 = vunpack.c.h.b16 %v109
  %v221 = vunpack.c.l.b16 %v110
  %v222 = vunpack.c.h.b16 %v110
  %v223 = vunpack.c.l.b16 %v111
  %v224 = vunpack.c.h.b16 %v111
  %v225 = vunpack.c.l.b16 %v112
  %v226 = vunpack.c.h.b16 %v112
  %v227 = vunpack.c.l.b16 %v113
  %v228 = vunpack.c.h.b16 %v113
  %v229 = vunpack.c.l.b16 %v114
  %v230 = vunpack.c.h.b16 %v114
  %v231 = vunpack.c.l.b16 %v115
  %v232 = vunpack.c.h.b16 %v115
  %v233 = vunpack.c.l.b16 %v116
  %v234 = vunpack.c.h.b16 %v116
  %v235 = vunpack.c.l.b16 %v117
  %v236 = vunpack.c.h.b16 %v117
  %v237 = vunpack.c.l.b16 %v118
  %v238 = vunpack.c.h.b16 %v118
  %v239 = vunpack.c.l.b16 %v119
  %v240 = vunpack.c.h.b16 %v119
  %v241 = vunpack.c.l.b16 %v120
  %v242 = vunpack.c.h.b16 %v120
  %v243 = vunpack.c.l.b16 %v121
  %v244 = vunpack.c.h.b16 %v121
  %v245 = vunpack.c.l.b16 %v122
  %v246 = vunpack.c.h.b16 %v122
  %v247 = vunpack.c.l.b16 %v123
  %v248 = vunpack.c.h.b16 %v123
  %v249 = vunpack.c.l.b16 %v124
  %v250 = vunpack.c.h.b16 %v124
  %v251 = vunpack.c.l.b16 %v125
  %v252 = vunpack.c.h.b16 %v125
  %v253 = vunpack.c.l.b16 %v126
  %v254 = vunpack.c.h.b16 %v126
  %v255 = vpack.c.b16 %v193, %v191
  %v256 = vpack.c.b16 %v194, %v192
  %v257 = vpack.c.b16 %v197, %v195
  %v258 = vpack.c.b16 %v198, %v196
  %v259 = vpack.c.b16 %v201, %v199
  %v260 = vpack.c.b16 %v202, %v200
  %v261 = vpack.c.b16 %v205, %v203
  %v262 = vpack.c.b16 %v206, %v204
  %v263 = vpack.c.b16 %v209, %v207
  %v264 = vpack.c.b16 %v210, %v208
  %v265 = vpack.c.b16 %v213, %v211
  %v266 = vpack.c.b16 %v214, %v212
  %v267 = vpack.c.b16 %v217, %v215
  %v268 = vpack.c.b16 %v218, %v216
  %v269 = vpack.c.b16 %v221, %v219
  %v270 = vpack.c.b16 %v222, %v220
  %v271 = vpack.c.b16 %v225, %v223
  %v272 = vpack.c.b16 %v226, %v224
  %v273 = vpack.c.b16 %v229, %v227
  %v274 = vpack.c.b16 %v230, %v228
  %v275 = vpack.c.b16 %v233, %v231
  %v276 = vpack.c.b16 %v234, %v232
  %v277 = vpack.c.b16 %v237, %v235
  %v278 = vpack.c.b16 %v238, %v236
  %v279 = vpack.c.b16 %v241, %v239
  %v280 = vpack.c.b16 %v242, %v240
  %v281 = vpack.c.b16 %v245, %v243
  %v282 = vpack.c.b16 %v246, %v244
  %v283 = vpack.c.b16 %v249, %v247
  %v284 = vpack.c.b16 %v250, %v248
  %v285 = vpack.c.b16 %v253, %v251
  %v286 = vpack.c.b16 %v254, %v252
  %v351 = vunpack.c.l.b16 %v127
  %v352 = vunpack.c.l.b16 %v128
  %v353 = vunpack.c.l.b16 %v129
  %v354 = vunpack.c.l.b16 %v130
  %v355 = vunpack.c.l.b16 %v131
  %v356 = vunpack.c.l.b16 %v132
  %v357 = vunpack.c.l.b16 %v133
  %v358 = vunpack.c.l.b16 %v134
  %v359 = vunpack.c.l.b16 %v135
  %v360 = vunpack.c.l.b16 %v136
  %v361 = vunpack.c.l.b16 %v137
  %v362 = vunpack.c.l.b16 %v138
  %v363 = vunpack.c.l.b16 %v139
  %v364 = vunpack.c.l.b16 %v140
  %v365 = vunpack.c.l.b16 %v141
  %v366 = vunpack.c.l.b16 %v142
  %v367 = vunpack.c.l.b16 %v143
  %v368 = vunpack.c.l.b16 %v144
  %v369 = vunpack.c.l.b16 %v145
  %v370 = vunpack.c.l.b16 %v146
  %v371 = vunpack.c.l.b16 %v147
  %v372 = vunpack.c.l.b16 %v148
  %v373 = vunpack.c.l.b16 %v149
  %v374 = vunpack.c.l.b16 %v150
  %v375 = vunpack.c.l.b16 %v151
  %v376 = vunpack.c.l.b16 %v152
  %v377 = vunpack.c.l.b16 %v153
  %v378 = vunpack.c.l.b16 %v154
  %v379 = vunpack.c.l.b16 %v155
  %v380 = vunpack.c.l.b16 %v156
  %v381 = vunpack.c.l.b16 %v157
  %v382 = vunpack.c.l.b16 %v158
  %v383 = vpack.c.b16 %v352, %v351
  %v384 = vpack.c.b16 %v354, %v353
  %v385 = vpack.c.b16 %v356, %v355
  %v386 = vpack.c.b16 %v358, %v357
  %v387 = vpack.c.b16 %v360, %v359
  %v388 = vpack.c.b16 %v362, %v361
  %v389 = vpack.c.b16 %v364, %v363
  %v390 = vpack.c.b16 %v366, %v365
  %v391 = vpack.c.b16 %v368, %v367
  %v392 = vpack.c.b16 %v370, %v369
  %v393 = vpack.c.b16 %v372, %v371
  %v394 = vpack.c.b16 %v374, %v373
  %v395 = vpack.c.b16 %v376, %v375
  %v396 = vpack.c.b16 %v378, %v377
  %v397 = vpack.c.b16 %v380, %v379
  %v398 = vpack.c.b16 %v382, %v381
  %415 = vmatprep.subr.bf16.mxu0 0
  %416 = vmatpush1.bf16.msra.mxu0 %v390
  %417 = vmatprep.subr.bf16.mxu0 0
  %418 = vmatpush1.bf16.msra.mxu0 %v389
  %419 = vmatprep.subr.bf16.mxu0 0
  %420 = vmatpush1.bf16.msra.mxu0 %v388
  %421 = vmatprep.subr.bf16.mxu0 0
  %422 = vmatpush1.bf16.msra.mxu0 %v387
  %423 = vmatprep.subr.bf16.mxu0 0
  %424 = vmatpush1.bf16.msra.mxu0 %v386
  %425 = vmatprep.subr.bf16.mxu0 0
  %426 = vmatpush1.bf16.msra.mxu0 %v385
  %427 = vmatprep.subr.bf16.mxu0 0
  %428 = vmatpush1.bf16.msra.mxu0 %v384
  %429 = vmatprep.subr.bf16.mxu0 0
  %430 = vmatpush1.bf16.msra.mxu0 %v383
  %431 = vmatprep.subr.bf16.mxu0 0
  %432 = vmatpush2.bf16.msra.mxu0 %v398
  %433 = vmatprep.subr.bf16.mxu0 0
  %434 = vmatpush2.bf16.msra.mxu0 %v397
  %435 = vmatprep.subr.bf16.mxu0 0
  %436 = vmatpush2.bf16.msra.mxu0 %v396
  %437 = vmatprep.subr.bf16.mxu0 0
  %438 = vmatpush2.bf16.msra.mxu0 %v395
  %439 = vmatprep.subr.bf16.mxu0 0
  %440 = vmatpush2.bf16.msra.mxu0 %v394
  %441 = vmatprep.subr.bf16.mxu0 0
  %442 = vmatpush2.bf16.msra.mxu0 %v393
  %443 = vmatprep.subr.bf16.mxu0 0
  %444 = vmatpush2.bf16.msra.mxu0 %v392
  %445 = vmatprep.subr.bf16.mxu0 0
  %446 = vmatpush2.bf16.msra.mxu0 %v391
  %447 = vmatprep.mubr.bf16.mxu0 %v256
  %448 = vmatmul.mubr.bf16.gmra.mxu0 %v255
  %v449 = vpop.f32.mrf.mxu0
  %v450 = vadd.f32 0.0, %v449
  %v451 = vpop.f32.mrf.mxu0
  %v452 = vpop.f32.mrf.mxu0
  %v453 = vadd.f32 0.0, %v452
  %v454 = vpop.f32.mrf.mxu0
  %455 = vmatprep.mubr.bf16.mxu0 %v258
  %456 = vmatmul.mubr.bf16.gmra.mxu0 %v257
  %v457 = vpop.f32.mrf.mxu0
  %v458 = vadd.f32 0.0, %v457
  %v459 = vpop.f32.mrf.mxu0
  %v460 = vpop.f32.mrf.mxu0
  %v461 = vadd.f32 0.0, %v460
  %v462 = vpop.f32.mrf.mxu0
  %463 = vmatprep.mubr.bf16.mxu0 %v260
  %464 = vmatmul.mubr.bf16.gmra.mxu0 %v259
  %v465 = vpop.f32.mrf.mxu0
  %v466 = vadd.f32 0.0, %v465
  %v467 = vpop.f32.mrf.mxu0
  %v468 = vpop.f32.mrf.mxu0
  %v469 = vadd.f32 0.0, %v468
  %v470 = vpop.f32.mrf.mxu0
  %471 = vmatprep.mubr.bf16.mxu0 %v262
  %472 = vmatmul.mubr.bf16.gmra.mxu0 %v261
  %v473 = vpop.f32.mrf.mxu0
  %v474 = vadd.f32 0.0, %v473
  %v475 = vpop.f32.mrf.mxu0
  %v476 = vpop.f32.mrf.mxu0
  %v477 = vadd.f32 0.0, %v476
  %v478 = vpop.f32.mrf.mxu0
  %479 = vmatprep.mubr.bf16.mxu0 %v264
  %480 = vmatmul.mubr.bf16.gmra.mxu0 %v263
  %v481 = vpop.f32.mrf.mxu0
  %v482 = vadd.f32 0.0, %v481
  %v483 = vpop.f32.mrf.mxu0
  %v484 = vpop.f32.mrf.mxu0
  %v485 = vadd.f32 0.0, %v484
  %v486 = vpop.f32.mrf.mxu0
  %487 = vmatprep.mubr.bf16.mxu0 %v266
  %488 = vmatmul.mubr.bf16.gmra.mxu0 %v265
  %v489 = vpop.f32.mrf.mxu0
  %v490 = vadd.f32 0.0, %v489
  %v491 = vpop.f32.mrf.mxu0
  %v492 = vpop.f32.mrf.mxu0
  %v493 = vadd.f32 0.0, %v492
  %v494 = vpop.f32.mrf.mxu0
  %495 = vmatprep.mubr.bf16.mxu0 %v268
  %496 = vmatmul.mubr.bf16.gmra.mxu0 %v267
  %v497 = vpop.f32.mrf.mxu0
  %v498 = vadd.f32 0.0, %v497
  %v499 = vpop.f32.mrf.mxu0
  %v500 = vpop.f32.mrf.mxu0
  %v501 = vadd.f32 0.0, %v500
  %v502 = vpop.f32.mrf.mxu0
  %503 = vmatprep.mubr.bf16.mxu0 %v270
  %504 = vmatmul.mubr.bf16.gmra.mxu0 %v269
  %v505 = vpop.f32.mrf.mxu0
  %v506 = vadd.f32 0.0, %v505
  %v507 = vpop.f32.mrf.mxu0
  %v508 = vpop.f32.mrf.mxu0
  %v509 = vadd.f32 0.0, %v508
  %v510 = vpop.f32.mrf.mxu0
  %511 = vmatprep.mubr.bf16.mxu0 %v272
  %512 = vmatmul.mubr.bf16.gmra.mxu0 %v271
  %v513 = vpop.f32.mrf.mxu0
  %v514 = vadd.f32 0.0, %v513
  %v515 = vpop.f32.mrf.mxu0
  %v516 = vpop.f32.mrf.mxu0
  %v517 = vadd.f32 0.0, %v516
  %v518 = vpop.f32.mrf.mxu0
  %519 = vmatprep.mubr.bf16.mxu0 %v274
  %520 = vmatmul.mubr.bf16.gmra.mxu0 %v273
  %v521 = vpop.f32.mrf.mxu0
  %v522 = vadd.f32 0.0, %v521
  %v523 = vpop.f32.mrf.mxu0
  %v524 = vpop.f32.mrf.mxu0
  %v525 = vadd.f32 0.0, %v524
  %v526 = vpop.f32.mrf.mxu0
  %527 = vmatprep.mubr.bf16.mxu0 %v276
  %528 = vmatmul.mubr.bf16.gmra.mxu0 %v275
  %v529 = vpop.f32.mrf.mxu0
  %v530 = vadd.f32 0.0, %v529
  %v531 = vpop.f32.mrf.mxu0
  %v532 = vpop.f32.mrf.mxu0
  %v533 = vadd.f32 0.0, %v532
  %v534 = vpop.f32.mrf.mxu0
  %535 = vmatprep.mubr.bf16.mxu0 %v278
  %536 = vmatmul.mubr.bf16.gmra.mxu0 %v277
  %v537 = vpop.f32.mrf.mxu0
  %v538 = vadd.f32 0.0, %v537
  %v539 = vpop.f32.mrf.mxu0
  %v540 = vpop.f32.mrf.mxu0
  %v541 = vadd.f32 0.0, %v540
  %v542 = vpop.f32.mrf.mxu0
  %543 = vmatprep.mubr.bf16.mxu0 %v280
  %544 = vmatmul.mubr.bf16.gmra.mxu0 %v279
  %v545 = vpop.f32.mrf.mxu0
  %v546 = vadd.f32 0.0, %v545
  %v547 = vpop.f32.mrf.mxu0
  %v548 = vpop.f32.mrf.mxu0
  %v549 = vadd.f32 0.0, %v548
  %v550 = vpop.f32.mrf.mxu0
  %551 = vmatprep.mubr.bf16.mxu0 %v282
  %552 = vmatmul.mubr.bf16.gmra.mxu0 %v281
  %v553 = vpop.f32.mrf.mxu0
  %v554 = vadd.f32 0.0, %v553
  %v555 = vpop.f32.mrf.mxu0
  %v556 = vpop.f32.mrf.mxu0
  %v557 = vadd.f32 0.0, %v556
  %v558 = vpop.f32.mrf.mxu0
  %559 = vmatprep.mubr.bf16.mxu0 %v284
  %560 = vmatmul.mubr.bf16.gmra.mxu0 %v283
  %v561 = vpop.f32.mrf.mxu0
  %v562 = vadd.f32 0.0, %v561
  %v563 = vpop.f32.mrf.mxu0
  %v564 = vpop.f32.mrf.mxu0
  %v565 = vadd.f32 0.0, %v564
  %v566 = vpop.f32.mrf.mxu0
  %567 = vmatprep.mubr.bf16.mxu0 %v286
  %568 = vmatmul.mubr.bf16.gmra.mxu0 %v285
  %v569 = vpop.f32.mrf.mxu0
  %v570 = vadd.f32 0.0, %v569
  %v571 = vpop.f32.mrf.mxu0
  %v572 = vpop.f32.mrf.mxu0
  %v573 = vadd.f32 0.0, %v572
  %v574 = vpop.f32.mrf.mxu0
  %575 = vdwg.mxu0
  %v576 = vadd.f32 %v63, %v450
  %v577 = vadd.f32 %v64, %v453
  %v578 = vadd.f32 %v65, %v458
  %v579 = vadd.f32 %v66, %v461
  %v580 = vadd.f32 %v67, %v466
  %v581 = vadd.f32 %v68, %v469
  %v582 = vadd.f32 %v69, %v474
  %v583 = vadd.f32 %v70, %v477
  %v584 = vadd.f32 %v71, %v482
  %v585 = vadd.f32 %v72, %v485
  %v586 = vadd.f32 %v73, %v490
  %v587 = vadd.f32 %v74, %v493
  %v588 = vadd.f32 %v75, %v498
  %v589 = vadd.f32 %v76, %v501
  %v590 = vadd.f32 %v77, %v506
  %v591 = vadd.f32 %v78, %v509
  %v592 = vadd.f32 %v79, %v514
  %v593 = vadd.f32 %v80, %v517
  %v594 = vadd.f32 %v81, %v522
  %v595 = vadd.f32 %v82, %v525
  %v596 = vadd.f32 %v83, %v530
  %v597 = vadd.f32 %v84, %v533
  %v598 = vadd.f32 %v85, %v538
  %v599 = vadd.f32 %v86, %v541
  %v600 = vadd.f32 %v87, %v546
  %v601 = vadd.f32 %v88, %v549
  %v602 = vadd.f32 %v89, %v554
  %v603 = vadd.f32 %v90, %v557
  %v604 = vadd.f32 %v91, %v562
  %v605 = vadd.f32 %v92, %v565
  %v606 = vadd.f32 %v93, %v570
  %v607 = vadd.f32 %v94, %v573
  %608 = vst [vmem:[#allocation2] sm:$0xff] %v576
  %609 = vst [vmem:[#allocation2 + $0x8] sm:$0xff] %v577
  %610 = vst [vmem:[#allocation2 + $0x10] sm:$0xff] %v578
  %611 = vst [vmem:[#allocation2 + $0x18] sm:$0xff] %v579
  %612 = vst [vmem:[#allocation2 + $0x20] sm:$0xff] %v580
  %613 = vst [vmem:[#allocation2 + $0x28] sm:$0xff] %v581
  %614 = vst [vmem:[#allocation2 + $0x30] sm:$0xff] %v582
  %615 = vst [vmem:[#allocation2 + $0x38] sm:$0xff] %v583
  %616 = vst [vmem:[#allocation2 + $0x40] sm:$0xff] %v584
  %617 = vst [vmem:[#allocation2 + $0x48] sm:$0xff] %v585
  %618 = vst [vmem:[#allocation2 + $0x50] sm:$0xff] %v586
  %619 = vst [vmem:[#allocation2 + $0x58] sm:$0xff] %v587
  %620 = vst [vmem:[#allocation2 + $0x60] sm:$0xff] %v588
  %621 = vst [vmem:[#allocation2 + $0x68] sm:$0xff] %v589
  %622 = vst [vmem:[#allocation2 + $0x70] sm:$0xff] %v590
  %623 = vst [vmem:[#allocation2 + $0x78] sm:$0xff] %v591
  %624 = vst [vmem:[#allocation2 + $0x80] sm:$0xff] %v592
  %625 = vst [vmem:[#allocation2 + $0x88] sm:$0xff] %v593
  %626 = vst [vmem:[#allocation2 + $0x90] sm:$0xff] %v594
  %627 = vst [vmem:[#allocation2 + $0x98] sm:$0xff] %v595
  %628 = vst [vmem:[#allocation2 + $0xa0] sm:$0xff] %v596
  %629 = vst [vmem:[#allocation2 + $0xa8] sm:$0xff] %v597
  %630 = vst [vmem:[#allocation2 + $0xb0] sm:$0xff] %v598
  %631 = vst [vmem:[#allocation2 + $0xb8] sm:$0xff] %v599
  %632 = vst [vmem:[#allocation2 + $0xc0] sm:$0xff] %v600
  %633 = vst [vmem:[#allocation2 + $0xc8] sm:$0xff] %v601
  %634 = vst [vmem:[#allocation2 + $0xd0] sm:$0xff] %v602
  %635 = vst [vmem:[#allocation2 + $0xd8] sm:$0xff] %v603
  %636 = vst [vmem:[#allocation2 + $0xe0] sm:$0xff] %v604
  %637 = vst [vmem:[#allocation2 + $0xe8] sm:$0xff] %v605
  %638 = vst [vmem:[#allocation2 + $0xf0] sm:$0xff] %v606
  %639 = vst [vmem:[#allocation2 + $0xf8] sm:$0xff] %v607
  // Predicated region
  $region34: #{gcn_forward.2} parent=0 // pred_check
    %p640 = pneg %p27
  $region35: #{gcn_forward.2} parent=0 // pred_check_branch
    %642 = sbr.rel (%p640) target = $region37
  $region36: #{gcn_forward.2} parent=0 // pred_region
    %v643 = vld [vmem:[#allocation2] sm:$0xff]
    %v644 = vld [vmem:[#allocation2 + $0x8] sm:$0xff]
    %v645 = vld [vmem:[#allocation2 + $0x10] sm:$0xff]
    %v646 = vld [vmem:[#allocation2 + $0x18] sm:$0xff]
    %v647 = vld [vmem:[#allocation2 + $0x20] sm:$0xff]
    %v648 = vld [vmem:[#allocation2 + $0x28] sm:$0xff]
    %v649 = vld [vmem:[#allocation2 + $0x30] sm:$0xff]
    %v650 = vld [vmem:[#allocation2 + $0x38] sm:$0xff]
    %v651 = vld [vmem:[#allocation2 + $0x40] sm:$0xff]
    %v652 = vld [vmem:[#allocation2 + $0x48] sm:$0xff]
    %v653 = vld [vmem:[#allocation2 + $0x50] sm:$0xff]
    %v654 = vld [vmem:[#allocation2 + $0x58] sm:$0xff]
    %v655 = vld [vmem:[#allocation2 + $0x60] sm:$0xff]
    %v656 = vld [vmem:[#allocation2 + $0x68] sm:$0xff]
    %v657 = vld [vmem:[#allocation2 + $0x70] sm:$0xff]
    %v658 = vld [vmem:[#allocation2 + $0x78] sm:$0xff]
    %v659 = vld [vmem:[#allocation2 + $0x80] sm:$0xff]
    %v660 = vld [vmem:[#allocation2 + $0x88] sm:$0xff]
    %v661 = vld [vmem:[#allocation2 + $0x90] sm:$0xff]
    %v662 = vld [vmem:[#allocation2 + $0x98] sm:$0xff]
    %v663 = vld [vmem:[#allocation2 + $0xa0] sm:$0xff]
    %v664 = vld [vmem:[#allocation2 + $0xa8] sm:$0xff]
    %v665 = vld [vmem:[#allocation2 + $0xb0] sm:$0xff]
    %v666 = vld [vmem:[#allocation2 + $0xb8] sm:$0xff]
    %v667 = vld [vmem:[#allocation2 + $0xc0] sm:$0xff]
    %v668 = vld [vmem:[#allocation2 + $0xc8] sm:$0xff]
    %v669 = vld [vmem:[#allocation2 + $0xd0] sm:$0xff]
    %v670 = vld [vmem:[#allocation2 + $0xd8] sm:$0xff]
    %v671 = vld [vmem:[#allocation2 + $0xe0] sm:$0xff]
    %v672 = vld [vmem:[#allocation2 + $0xe8] sm:$0xff]
    %v673 = vld [vmem:[#allocation2 + $0xf0] sm:$0xff]
    %v674 = vld [vmem:[#allocation2 + $0xf8] sm:$0xff]
    %v675 = vpack.c.bf16 %v644, %v643
    %v676 = vpack.c.bf16 %v646, %v645
    %v677 = vpack.c.bf16 %v648, %v647
    %v678 = vpack.c.bf16 %v650, %v649
    %v679 = vpack.c.bf16 %v652, %v651
    %v680 = vpack.c.bf16 %v654, %v653
    %v681 = vpack.c.bf16 %v656, %v655
    %v682 = vpack.c.bf16 %v658, %v657
    %v683 = vpack.c.bf16 %v660, %v659
    %v684 = vpack.c.bf16 %v662, %v661
    %v685 = vpack.c.bf16 %v664, %v663
    %v686 = vpack.c.bf16 %v666, %v665
    %v687 = vpack.c.bf16 %v668, %v667
    %v688 = vpack.c.bf16 %v670, %v669
    %v689 = vpack.c.bf16 %v672, %v671
    %v690 = vpack.c.bf16 %v674, %v673
    %v691 = vld [vmem:[%s3] sm:$0xf]
    %v692 = vld [vmem:[%s3 + $0x4] sm:$0xf]
    %v693 = vld [vmem:[%s3 + $0x8] sm:$0xf]
    %v694 = vld [vmem:[%s3 + $0xc] sm:$0xf]
    %v695 = vld [vmem:[%s3 + $0x10] sm:$0xf]
    %v696 = vld [vmem:[%s3 + $0x14] sm:$0xf]
    %v697 = vld [vmem:[%s3 + $0x18] sm:$0xf]
    %v698 = vld [vmem:[%s3 + $0x1c] sm:$0xf]
    %v699 = vld [vmem:[%s3 + $0x20] sm:$0xf]
    %v700 = vld [vmem:[%s3 + $0x24] sm:$0xf]
    %v701 = vld [vmem:[%s3 + $0x28] sm:$0xf]
    %v702 = vld [vmem:[%s3 + $0x2c] sm:$0xf]
    %v703 = vld [vmem:[%s3 + $0x30] sm:$0xf]
    %v704 = vld [vmem:[%s3 + $0x34] sm:$0xf]
    %v705 = vld [vmem:[%s3 + $0x38] sm:$0xf]
    %v706 = vld [vmem:[%s3 + $0x3c] sm:$0xf]
    %v707 = vld [vmem:[%s2] sm:$0xff]
    %v708 = vld [vmem:[%s2 + $0x8] sm:$0xff]
    %v709 = vld [vmem:[%s2 + $0x10] sm:$0xff]
    %v710 = vld [vmem:[%s2 + $0x18] sm:$0xff]
    %v711 = vld [vmem:[%s2 + $0x20] sm:$0xff]
    %v712 = vld [vmem:[%s2 + $0x28] sm:$0xff]
    %v713 = vld [vmem:[%s2 + $0x30] sm:$0xff]
    %v714 = vld [vmem:[%s2 + $0x38] sm:$0xff]
    %v715 = vld [vmem:[%s2 + $0x40] sm:$0xff]
    %v716 = vld [vmem:[%s2 + $0x48] sm:$0xff]
    %v717 = vld [vmem:[%s2 + $0x50] sm:$0xff]
    %v718 = vld [vmem:[%s2 + $0x58] sm:$0xff]
    %v719 = vld [vmem:[%s2 + $0x60] sm:$0xff]
    %v720 = vld [vmem:[%s2 + $0x68] sm:$0xff]
    %v721 = vld [vmem:[%s2 + $0x70] sm:$0xff]
    %v722 = vld [vmem:[%s2 + $0x78] sm:$0xff]
    %v723 = vld [vmem:[%s2 + $0x80] sm:$0xff]
    %v724 = vld [vmem:[%s2 + $0x88] sm:$0xff]
    %v725 = vld [vmem:[%s2 + $0x90] sm:$0xff]
    %v726 = vld [vmem:[%s2 + $0x98] sm:$0xff]
    %v727 = vld [vmem:[%s2 + $0xa0] sm:$0xff]
    %v728 = vld [vmem:[%s2 + $0xa8] sm:$0xff]
    %v729 = vld [vmem:[%s2 + $0xb0] sm:$0xff]
    %v730 = vld [vmem:[%s2 + $0xb8] sm:$0xff]
    %v731 = vld [vmem:[%s2 + $0xc0] sm:$0xff]
    %v732 = vld [vmem:[%s2 + $0xc8] sm:$0xff]
    %v733 = vld [vmem:[%s2 + $0xd0] sm:$0xff]
    %v734 = vld [vmem:[%s2 + $0xd8] sm:$0xff]
    %v735 = vld [vmem:[%s2 + $0xe0] sm:$0xff]
    %v736 = vld [vmem:[%s2 + $0xe8] sm:$0xff]
    %v737 = vld [vmem:[%s2 + $0xf0] sm:$0xff]
    %v738 = vld [vmem:[%s2 + $0xf8] sm:$0xff]
    %v739 = vld [vmem:[%s4] sm:$0x1]
    %741 = vset.pattern.permute.xlu0 0
    %742 = vperm.xlu0 %741, %v707
    %v743 = vpop.permute.xlu0 %742
    %746 = vset.pattern.permute.xlu0 0
    %747 = vperm.xlu0 %746, %v708
    %v748 = vpop.permute.xlu0 %747
    %751 = vset.pattern.permute.xlu0 0
    %752 = vperm.xlu0 %751, %v709
    %v753 = vpop.permute.xlu0 %752
    %756 = vset.pattern.permute.xlu0 0
    %757 = vperm.xlu0 %756, %v710
    %v758 = vpop.permute.xlu0 %757
    %761 = vset.pattern.permute.xlu0 0
    %762 = vperm.xlu0 %761, %v711
    %v763 = vpop.permute.xlu0 %762
    %766 = vset.pattern.permute.xlu0 0
    %767 = vperm.xlu0 %766, %v712
    %v768 = vpop.permute.xlu0 %767
    %771 = vset.pattern.permute.xlu0 0
    %772 = vperm.xlu0 %771, %v713
    %v773 = vpop.permute.xlu0 %772
    %776 = vset.pattern.permute.xlu0 0
    %777 = vperm.xlu0 %776, %v714
    %v778 = vpop.permute.xlu0 %777
    %781 = vset.pattern.permute.xlu0 0
    %782 = vperm.xlu0 %781, %v715
    %v783 = vpop.permute.xlu0 %782
    %786 = vset.pattern.permute.xlu0 0
    %787 = vperm.xlu0 %786, %v716
    %v788 = vpop.permute.xlu0 %787
    %791 = vset.pattern.permute.xlu0 0
    %792 = vperm.xlu0 %791, %v717
    %v793 = vpop.permute.xlu0 %792
    %796 = vset.pattern.permute.xlu0 0
    %797 = vperm.xlu0 %796, %v718
    %v798 = vpop.permute.xlu0 %797
    %801 = vset.pattern.permute.xlu0 0
    %802 = vperm.xlu0 %801, %v719
    %v803 = vpop.permute.xlu0 %802
    %806 = vset.pattern.permute.xlu0 0
    %807 = vperm.xlu0 %806, %v720
    %v808 = vpop.permute.xlu0 %807
    %811 = vset.pattern.permute.xlu0 0
    %812 = vperm.xlu0 %811, %v721
    %v813 = vpop.permute.xlu0 %812
    %816 = vset.pattern.permute.xlu0 0
    %817 = vperm.xlu0 %816, %v722
    %v818 = vpop.permute.xlu0 %817
    %821 = vset.pattern.permute.xlu0 0
    %822 = vperm.xlu0 %821, %v723
    %v823 = vpop.permute.xlu0 %822
    %826 = vset.pattern.permute.xlu0 0
    %827 = vperm.xlu0 %826, %v724
    %v828 = vpop.permute.xlu0 %827
    %831 = vset.pattern.permute.xlu0 0
    %832 = vperm.xlu0 %831, %v725
    %v833 = vpop.permute.xlu0 %832
    %836 = vset.pattern.permute.xlu0 0
    %837 = vperm.xlu0 %836, %v726
    %v838 = vpop.permute.xlu0 %837
    %841 = vset.pattern.permute.xlu0 0
    %842 = vperm.xlu0 %841, %v727
    %v843 = vpop.permute.xlu0 %842
    %846 = vset.pattern.permute.xlu0 0
    %847 = vperm.xlu0 %846, %v728
    %v848 = vpop.permute.xlu0 %847
    %851 = vset.pattern.permute.xlu0 0
    %852 = vperm.xlu0 %851, %v729
    %v853 = vpop.permute.xlu0 %852
    %856 = vset.pattern.permute.xlu0 0
    %857 = vperm.xlu0 %856, %v730
    %v858 = vpop.permute.xlu0 %857
    %861 = vset.pattern.permute.xlu0 0
    %862 = vperm.xlu0 %861, %v731
    %v863 = vpop.permute.xlu0 %862
    %866 = vset.pattern.permute.xlu0 0
    %867 = vperm.xlu0 %866, %v732
    %v868 = vpop.permute.xlu0 %867
    %871 = vset.pattern.permute.xlu0 0
    %872 = vperm.xlu0 %871, %v733
    %v873 = vpop.permute.xlu0 %872
    %876 = vset.pattern.permute.xlu0 0
    %877 = vperm.xlu0 %876, %v734
    %v878 = vpop.permute.xlu0 %877
    %881 = vset.pattern.permute.xlu0 0
    %882 = vperm.xlu0 %881, %v735
    %v883 = vpop.permute.xlu0 %882
    %886 = vset.pattern.permute.xlu0 0
    %887 = vperm.xlu0 %886, %v736
    %v888 = vpop.permute.xlu0 %887
    %891 = vset.pattern.permute.xlu0 0
    %892 = vperm.xlu0 %891, %v737
    %v893 = vpop.permute.xlu0 %892
    %896 = vset.pattern.permute.xlu0 0
    %897 = vperm.xlu0 %896, %v738
    %v898 = vpop.permute.xlu0 %897
    %v901 = vlaneseq
    %v902 = vshrl.u32 %v901, 7
    %v903 = vsub.s32 0, %v902
    %v904 = vrot.slane %v739, %v903
    %v906 = vmul.f32 %v743, %v904
    %v907 = vmul.f32 %v748, %v904
    %v908 = vmul.f32 %v753, %v904
    %v909 = vmul.f32 %v758, %v904
    %v910 = vmul.f32 %v763, %v904
    %v911 = vmul.f32 %v768, %v904
    %v912 = vmul.f32 %v773, %v904
    %v913 = vmul.f32 %v778, %v904
    %v914 = vmul.f32 %v783, %v904
    %v915 = vmul.f32 %v788, %v904
    %v916 = vmul.f32 %v793, %v904
    %v917 = vmul.f32 %v798, %v904
    %v918 = vmul.f32 %v803, %v904
    %v919 = vmul.f32 %v808, %v904
    %v920 = vmul.f32 %v813, %v904
    %v921 = vmul.f32 %v818, %v904
    %v922 = vmul.f32 %v823, %v904
    %v923 = vmul.f32 %v828, %v904
    %v924 = vmul.f32 %v833, %v904
    %v925 = vmul.f32 %v838, %v904
    %v926 = vmul.f32 %v843, %v904
    %v927 = vmul.f32 %v848, %v904
    %v928 = vmul.f32 %v853, %v904
    %v929 = vmul.f32 %v858, %v904
    %v930 = vmul.f32 %v863, %v904
    %v931 = vmul.f32 %v868, %v904
    %v932 = vmul.f32 %v873, %v904
    %v933 = vmul.f32 %v878, %v904
    %v934 = vmul.f32 %v883, %v904
    %v935 = vmul.f32 %v888, %v904
    %v936 = vmul.f32 %v893, %v904
    %v937 = vmul.f32 %v898, %v904
    %v954 = vunpack.c.l.b16 %v691
    %v955 = vunpack.c.l.b16 %v692
    %v956 = vunpack.c.l.b16 %v693
    %v957 = vunpack.c.l.b16 %v694
    %v958 = vunpack.c.l.b16 %v695
    %v959 = vunpack.c.l.b16 %v696
    %v960 = vunpack.c.l.b16 %v697
    %v961 = vunpack.c.l.b16 %v698
    %v962 = vunpack.c.l.b16 %v699
    %v963 = vunpack.c.l.b16 %v700
    %v964 = vunpack.c.l.b16 %v701
    %v965 = vunpack.c.l.b16 %v702
    %v966 = vunpack.c.l.b16 %v703
    %v967 = vunpack.c.l.b16 %v704
    %v968 = vunpack.c.l.b16 %v705
    %v969 = vunpack.c.l.b16 %v706
    %v970 = vpack.c.b16 %v955, %v954
    %v971 = vpack.c.b16 %v957, %v956
    %v972 = vpack.c.b16 %v959, %v958
    %v973 = vpack.c.b16 %v961, %v960
    %v974 = vpack.c.b16 %v963, %v962
    %v975 = vpack.c.b16 %v965, %v964
    %v976 = vpack.c.b16 %v967, %v966
    %v977 = vpack.c.b16 %v969, %v968
    %986 = vmatprep.subr.bf16.mxu0 0
    %987 = vmatpush1.bf16.msra.mxu0 %v977
    %988 = vmatprep.subr.bf16.mxu0 0
    %989 = vmatpush1.bf16.msra.mxu0 %v976
    %990 = vmatprep.subr.bf16.mxu0 0
    %991 = vmatpush1.bf16.msra.mxu0 %v975
    %992 = vmatprep.subr.bf16.mxu0 0
    %993 = vmatpush1.bf16.msra.mxu0 %v974
    %994 = vmatprep.subr.bf16.mxu0 0
    %995 = vmatpush1.bf16.msra.mxu0 %v973
    %996 = vmatprep.subr.bf16.mxu0 0
    %997 = vmatpush1.bf16.msra.mxu0 %v972
    %998 = vmatprep.subr.bf16.mxu0 0
    %999 = vmatpush1.bf16.msra.mxu0 %v971
    %1000 = vmatprep.subr.bf16.mxu0 0
    %1001 = vmatpush1.bf16.msra.mxu0 %v970
    %1002 = vmatprep.subr.bf16.mxu0 0
    %1003 = vmatpush2.bf16.msra.mxu0 0
    %1004 = vmatprep.subr.bf16.mxu0 0
    %1005 = vmatpush2.bf16.msra.mxu0 0
    %1006 = vmatprep.subr.bf16.mxu0 0
    %1007 = vmatpush2.bf16.msra.mxu0 0
    %1008 = vmatprep.subr.bf16.mxu0 0
    %1009 = vmatpush2.bf16.msra.mxu0 0
    %1010 = vmatprep.subr.bf16.mxu0 0
    %1011 = vmatpush2.bf16.msra.mxu0 0
    %1012 = vmatprep.subr.bf16.mxu0 0
    %1013 = vmatpush2.bf16.msra.mxu0 0
    %1014 = vmatprep.subr.bf16.mxu0 0
    %1015 = vmatpush2.bf16.msra.mxu0 0
    %1016 = vmatprep.subr.bf16.mxu0 0
    %1017 = vmatpush2.bf16.msra.mxu0 0
    %1018 = vmatprep.mubr.bf16.mxu0 0
    %1019 = vmatmul.mubr.bf16.gmra.mxu0 %v675
    %v1020 = vpop.f32.mrf.mxu0
    %v1021 = vadd.f32 %v906, %v1020
    %v1022 = vpop.f32.mrf.mxu0
    %v1023 = vpop.f32.mrf.mxu0
    %v1024 = vadd.f32 %v907, %v1023
    %v1025 = vpop.f32.mrf.mxu0
    %1026 = vmatprep.mubr.bf16.mxu0 0
    %1027 = vmatmul.mubr.bf16.gmra.mxu0 %v676
    %v1028 = vpop.f32.mrf.mxu0
    %v1029 = vadd.f32 %v908, %v1028
    %v1030 = vpop.f32.mrf.mxu0
    %v1031 = vpop.f32.mrf.mxu0
    %v1032 = vadd.f32 %v909, %v1031
    %v1033 = vpop.f32.mrf.mxu0
    %1034 = vmatprep.mubr.bf16.mxu0 0
    %1035 = vmatmul.mubr.bf16.gmra.mxu0 %v677
    %v1036 = vpop.f32.mrf.mxu0
    %v1037 = vadd.f32 %v910, %v1036
    %v1038 = vpop.f32.mrf.mxu0
    %v1039 = vpop.f32.mrf.mxu0
    %v1040 = vadd.f32 %v911, %v1039
    %v1041 = vpop.f32.mrf.mxu0
    %1042 = vmatprep.mubr.bf16.mxu0 0
    %1043 = vmatmul.mubr.bf16.gmra.mxu0 %v678
    %v1044 = vpop.f32.mrf.mxu0
    %v1045 = vadd.f32 %v912, %v1044
    %v1046 = vpop.f32.mrf.mxu0
    %v1047 = vpop.f32.mrf.mxu0
    %v1048 = vadd.f32 %v913, %v1047
    %v1049 = vpop.f32.mrf.mxu0
    %1050 = vmatprep.mubr.bf16.mxu0 0
    %1051 = vmatmul.mubr.bf16.gmra.mxu0 %v679
    %v1052 = vpop.f32.mrf.mxu0
    %v1053 = vadd.f32 %v914, %v1052
    %v1054 = vpop.f32.mrf.mxu0
    %v1055 = vpop.f32.mrf.mxu0
    %v1056 = vadd.f32 %v915, %v1055
    %v1057 = vpop.f32.mrf.mxu0
    %1058 = vmatprep.mubr.bf16.mxu0 0
    %1059 = vmatmul.mubr.bf16.gmra.mxu0 %v680
    %v1060 = vpop.f32.mrf.mxu0
    %v1061 = vadd.f32 %v916, %v1060
    %v1062 = vpop.f32.mrf.mxu0
    %v1063 = vpop.f32.mrf.mxu0
    %v1064 = vadd.f32 %v917, %v1063
    %v1065 = vpop.f32.mrf.mxu0
    %1066 = vmatprep.mubr.bf16.mxu0 0
    %1067 = vmatmul.mubr.bf16.gmra.mxu0 %v681
    %v1068 = vpop.f32.mrf.mxu0
    %v1069 = vadd.f32 %v918, %v1068
    %v1070 = vpop.f32.mrf.mxu0
    %v1071 = vpop.f32.mrf.mxu0
    %v1072 = vadd.f32 %v919, %v1071
    %v1073 = vpop.f32.mrf.mxu0
    %1074 = vmatprep.mubr.bf16.mxu0 0
    %1075 = vmatmul.mubr.bf16.gmra.mxu0 %v682
    %v1076 = vpop.f32.mrf.mxu0
    %v1077 = vadd.f32 %v920, %v1076
    %v1078 = vpop.f32.mrf.mxu0
    %v1079 = vpop.f32.mrf.mxu0
    %v1080 = vadd.f32 %v921, %v1079
    %v1081 = vpop.f32.mrf.mxu0
    %1082 = vmatprep.mubr.bf16.mxu0 0
    %1083 = vmatmul.mubr.bf16.gmra.mxu0 %v683
    %v1084 = vpop.f32.mrf.mxu0
    %v1085 = vadd.f32 %v922, %v1084
    %v1086 = vpop.f32.mrf.mxu0
    %v1087 = vpop.f32.mrf.mxu0
    %v1088 = vadd.f32 %v923, %v1087
    %v1089 = vpop.f32.mrf.mxu0
    %1090 = vmatprep.mubr.bf16.mxu0 0
    %1091 = vmatmul.mubr.bf16.gmra.mxu0 %v684
    %v1092 = vpop.f32.mrf.mxu0
    %v1093 = vadd.f32 %v924, %v1092
    %v1094 = vpop.f32.mrf.mxu0
    %v1095 = vpop.f32.mrf.mxu0
    %v1096 = vadd.f32 %v925, %v1095
    %v1097 = vpop.f32.mrf.mxu0
    %1098 = vmatprep.mubr.bf16.mxu0 0
    %1099 = vmatmul.mubr.bf16.gmra.mxu0 %v685
    %v1100 = vpop.f32.mrf.mxu0
    %v1101 = vadd.f32 %v926, %v1100
    %v1102 = vpop.f32.mrf.mxu0
    %v1103 = vpop.f32.mrf.mxu0
    %v1104 = vadd.f32 %v927, %v1103
    %v1105 = vpop.f32.mrf.mxu0
    %1106 = vmatprep.mubr.bf16.mxu0 0
    %1107 = vmatmul.mubr.bf16.gmra.mxu0 %v686
    %v1108 = vpop.f32.mrf.mxu0
    %v1109 = vadd.f32 %v928, %v1108
    %v1110 = vpop.f32.mrf.mxu0
    %v1111 = vpop.f32.mrf.mxu0
    %v1112 = vadd.f32 %v929, %v1111
    %v1113 = vpop.f32.mrf.mxu0
    %1114 = vmatprep.mubr.bf16.mxu0 0
    %1115 = vmatmul.mubr.bf16.gmra.mxu0 %v687
    %v1116 = vpop.f32.mrf.mxu0
    %v1117 = vadd.f32 %v930, %v1116
    %v1118 = vpop.f32.mrf.mxu0
    %v1119 = vpop.f32.mrf.mxu0
    %v1120 = vadd.f32 %v931, %v1119
    %v1121 = vpop.f32.mrf.mxu0
    %1122 = vmatprep.mubr.bf16.mxu0 0
    %1123 = vmatmul.mubr.bf16.gmra.mxu0 %v688
    %v1124 = vpop.f32.mrf.mxu0
    %v1125 = vadd.f32 %v932, %v1124
    %v1126 = vpop.f32.mrf.mxu0
    %v1127 = vpop.f32.mrf.mxu0
    %v1128 = vadd.f32 %v933, %v1127
    %v1129 = vpop.f32.mrf.mxu0
    %1130 = vmatprep.mubr.bf16.mxu0 0
    %1131 = vmatmul.mubr.bf16.gmra.mxu0 %v689
    %v1132 = vpop.f32.mrf.mxu0
    %v1133 = vadd.f32 %v934, %v1132
    %v1134 = vpop.f32.mrf.mxu0
    %v1135 = vpop.f32.mrf.mxu0
    %v1136 = vadd.f32 %v935, %v1135
    %v1137 = vpop.f32.mrf.mxu0
    %1138 = vmatprep.mubr.bf16.mxu0 0
    %1139 = vmatmul.mubr.bf16.gmra.mxu0 %v690
    %v1140 = vpop.f32.mrf.mxu0
    %v1141 = vadd.f32 %v936, %v1140
    %v1142 = vpop.f32.mrf.mxu0
    %v1143 = vpop.f32.mrf.mxu0
    %v1144 = vadd.f32 %v937, %v1143
    %v1145 = vpop.f32.mrf.mxu0
    %1146 = vdwg.mxu0
    %v1147 = vmax.f32 %v1021, 0.0
    %v1148 = vmax.f32 %v1024, 0.0
    %v1149 = vmax.f32 %v1029, 0.0
    %v1150 = vmax.f32 %v1032, 0.0
    %v1151 = vmax.f32 %v1037, 0.0
    %v1152 = vmax.f32 %v1040, 0.0
    %v1153 = vmax.f32 %v1045, 0.0
    %v1154 = vmax.f32 %v1048, 0.0
    %v1155 = vmax.f32 %v1053, 0.0
    %v1156 = vmax.f32 %v1056, 0.0
    %v1157 = vmax.f32 %v1061, 0.0
    %v1158 = vmax.f32 %v1064, 0.0
    %v1159 = vmax.f32 %v1069, 0.0
    %v1160 = vmax.f32 %v1072, 0.0
    %v1161 = vmax.f32 %v1077, 0.0
    %v1162 = vmax.f32 %v1080, 0.0
    %v1163 = vmax.f32 %v1085, 0.0
    %v1164 = vmax.f32 %v1088, 0.0
    %v1165 = vmax.f32 %v1093, 0.0
    %v1166 = vmax.f32 %v1096, 0.0
    %v1167 = vmax.f32 %v1101, 0.0
    %v1168 = vmax.f32 %v1104, 0.0
    %v1169 = vmax.f32 %v1109, 0.0
    %v1170 = vmax.f32 %v1112, 0.0
    %v1171 = vmax.f32 %v1117, 0.0
    %v1172 = vmax.f32 %v1120, 0.0
    %v1173 = vmax.f32 %v1125, 0.0
    %v1174 = vmax.f32 %v1128, 0.0
    %v1175 = vmax.f32 %v1133, 0.0
    %v1176 = vmax.f32 %v1136, 0.0
    %v1177 = vmax.f32 %v1141, 0.0
    %v1178 = vmax.f32 %v1144, 0.0
    %v1179 = vpack.c.bf16 %v1148, %v1147
    %v1180 = vpack.c.bf16 %v1150, %v1149
    %v1181 = vpack.c.bf16 %v1152, %v1151
    %v1182 = vpack.c.bf16 %v1154, %v1153
    %v1183 = vpack.c.bf16 %v1156, %v1155
    %v1184 = vpack.c.bf16 %v1158, %v1157
    %v1185 = vpack.c.bf16 %v1160, %v1159
    %v1186 = vpack.c.bf16 %v1162, %v1161
    %v1187 = vpack.c.bf16 %v1164, %v1163
    %v1188 = vpack.c.bf16 %v1166, %v1165
    %v1189 = vpack.c.bf16 %v1168, %v1167
    %v1190 = vpack.c.bf16 %v1170, %v1169
    %v1191 = vpack.c.bf16 %v1172, %v1171
    %v1192 = vpack.c.bf16 %v1174, %v1173
    %v1193 = vpack.c.bf16 %v1176, %v1175
    %v1194 = vpack.c.bf16 %v1178, %v1177
    %v1195 = vld [vmem:[%s5] sm:$0xf]
    %v1196 = vld [vmem:[%s5 + $0x4] sm:$0xf]
    %v1197 = vld [vmem:[%s5 + $0x8] sm:$0xf]
    %v1198 = vld [vmem:[%s5 + $0xc] sm:$0xf]
    %v1199 = vld [vmem:[%s5 + $0x10] sm:$0xf]
    %v1200 = vld [vmem:[%s5 + $0x14] sm:$0xf]
    %v1201 = vld [vmem:[%s5 + $0x18] sm:$0xf]
    %v1202 = vld [vmem:[%s5 + $0x1c] sm:$0xf]
    %v1203 = vld [vmem:[%s5 + $0x20] sm:$0xf]
    %v1204 = vld [vmem:[%s5 + $0x24] sm:$0xf]
    %v1205 = vld [vmem:[%s5 + $0x28] sm:$0xf]
    %v1206 = vld [vmem:[%s5 + $0x2c] sm:$0xf]
    %v1207 = vld [vmem:[%s5 + $0x30] sm:$0xf]
    %v1208 = vld [vmem:[%s5 + $0x34] sm:$0xf]
    %v1209 = vld [vmem:[%s5 + $0x38] sm:$0xf]
    %v1210 = vld [vmem:[%s5 + $0x3c] sm:$0xf]
    %v1211 = vld [vmem:[%s6] sm:$0x1]
    %v1213 = vlaneseq
    %v1214 = vshrl.u32 %v1213, 7
    %v1215 = vsub.s32 0, %v1214
    %v1216 = vrot.slane %v1211, %v1215
    %v1234 = vunpack.c.l.b16 %v1195
    %v1235 = vunpack.c.l.b16 %v1196
    %v1236 = vunpack.c.l.b16 %v1197
    %v1237 = vunpack.c.l.b16 %v1198
    %v1238 = vunpack.c.l.b16 %v1199
    %v1239 = vunpack.c.l.b16 %v1200
    %v1240 = vunpack.c.l.b16 %v1201
    %v1241 = vunpack.c.l.b16 %v1202
    %v1242 = vunpack.c.l.b16 %v1203
    %v1243 = vunpack.c.l.b16 %v1204
    %v1244 = vunpack.c.l.b16 %v1205
    %v1245 = vunpack.c.l.b16 %v1206
    %v1246 = vunpack.c.l.b16 %v1207
    %v1247 = vunpack.c.l.b16 %v1208
    %v1248 = vunpack.c.l.b16 %v1209
    %v1249 = vunpack.c.l.b16 %v1210
    %v1250 = vpack.c.b16 %v1235, %v1234
    %v1251 = vpack.c.b16 %v1237, %v1236
    %v1252 = vpack.c.b16 %v1239, %v1238
    %v1253 = vpack.c.b16 %v1241, %v1240
    %v1254 = vpack.c.b16 %v1243, %v1242
    %v1255 = vpack.c.b16 %v1245, %v1244
    %v1256 = vpack.c.b16 %v1247, %v1246
    %v1257 = vpack.c.b16 %v1249, %v1248
    %1266 = vmatprep.subr.bf16.mxu0 0
    %1267 = vmatpush1.bf16.msra.mxu0 %v1257
    %1268 = vmatprep.subr.bf16.mxu0 0
    %1269 = vmatpush1.bf16.msra.mxu0 %v1256
    %1270 = vmatprep.subr.bf16.mxu0 0
    %1271 = vmatpush1.bf16.msra.mxu0 %v1255
    %1272 = vmatprep.subr.bf16.mxu0 0
    %1273 = vmatpush1.bf16.msra.mxu0 %v1254
    %1274 = vmatprep.subr.bf16.mxu0 0
    %1275 = vmatpush1.bf16.msra.mxu0 %v1253
    %1276 = vmatprep.subr.bf16.mxu0 0
    %1277 = vmatpush1.bf16.msra.mxu0 %v1252
    %1278 = vmatprep.subr.bf16.mxu0 0
    %1279 = vmatpush1.bf16.msra.mxu0 %v1251
    %1280 = vmatprep.subr.bf16.mxu0 0
    %1281 = vmatpush1.bf16.msra.mxu0 %v1250
    %1282 = vmatprep.subr.bf16.mxu0 0
    %1283 = vmatpush2.bf16.msra.mxu0 0
    %1284 = vmatprep.subr.bf16.mxu0 0
    %1285 = vmatpush2.bf16.msra.mxu0 0
    %1286 = vmatprep.subr.bf16.mxu0 0
    %1287 = vmatpush2.bf16.msra.mxu0 0
    %1288 = vmatprep.subr.bf16.mxu0 0
    %1289 = vmatpush2.bf16.msra.mxu0 0
    %1290 = vmatprep.subr.bf16.mxu0 0
    %1291 = vmatpush2.bf16.msra.mxu0 0
    %1292 = vmatprep.subr.bf16.mxu0 0
    %1293 = vmatpush2.bf16.msra.mxu0 0
    %1294 = vmatprep.subr.bf16.mxu0 0
    %1295 = vmatpush2.bf16.msra.mxu0 0
    %1296 = vmatprep.subr.bf16.mxu0 0
    %1297 = vmatpush2.bf16.msra.mxu0 0
    %1298 = vmatprep.mubr.bf16.mxu0 0
    %1299 = vmatmul.mubr.bf16.gmra.mxu0 %v1179
    %v1300 = vpop.f32.mrf.mxu0
    %v1301 = vadd.f32 %v1216, %v1300
    %v1302 = vpop.f32.mrf.mxu0
    %v1303 = vpop.f32.mrf.mxu0
    %v1304 = vadd.f32 %v1216, %v1303
    %v1305 = vpop.f32.mrf.mxu0
    %1306 = vmatprep.mubr.bf16.mxu0 0
    %1307 = vmatmul.mubr.bf16.gmra.mxu0 %v1180
    %v1308 = vpop.f32.mrf.mxu0
    %v1309 = vadd.f32 %v1216, %v1308
    %v1310 = vpop.f32.mrf.mxu0
    %v1311 = vpop.f32.mrf.mxu0
    %v1312 = vadd.f32 %v1216, %v1311
    %v1313 = vpop.f32.mrf.mxu0
    %1314 = vmatprep.mubr.bf16.mxu0 0
    %1315 = vmatmul.mubr.bf16.gmra.mxu0 %v1181
    %v1316 = vpop.f32.mrf.mxu0
    %v1317 = vadd.f32 %v1216, %v1316
    %v1318 = vpop.f32.mrf.mxu0
    %v1319 = vpop.f32.mrf.mxu0
    %v1320 = vadd.f32 %v1216, %v1319
    %v1321 = vpop.f32.mrf.mxu0
    %1322 = vmatprep.mubr.bf16.mxu0 0
    %1323 = vmatmul.mubr.bf16.gmra.mxu0 %v1182
    %v1324 = vpop.f32.mrf.mxu0
    %v1325 = vadd.f32 %v1216, %v1324
    %v1326 = vpop.f32.mrf.mxu0
    %v1327 = vpop.f32.mrf.mxu0
    %v1328 = vadd.f32 %v1216, %v1327
    %v1329 = vpop.f32.mrf.mxu0
    %1330 = vmatprep.mubr.bf16.mxu0 0
    %1331 = vmatmul.mubr.bf16.gmra.mxu0 %v1183
    %v1332 = vpop.f32.mrf.mxu0
    %v1333 = vadd.f32 %v1216, %v1332
    %v1334 = vpop.f32.mrf.mxu0
    %v1335 = vpop.f32.mrf.mxu0
    %v1336 = vadd.f32 %v1216, %v1335
    %v1337 = vpop.f32.mrf.mxu0
    %1338 = vmatprep.mubr.bf16.mxu0 0
    %1339 = vmatmul.mubr.bf16.gmra.mxu0 %v1184
    %v1340 = vpop.f32.mrf.mxu0
    %v1341 = vadd.f32 %v1216, %v1340
    %v1342 = vpop.f32.mrf.mxu0
    %v1343 = vpop.f32.mrf.mxu0
    %v1344 = vadd.f32 %v1216, %v1343
    %v1345 = vpop.f32.mrf.mxu0
    %1346 = vmatprep.mubr.bf16.mxu0 0
    %1347 = vmatmul.mubr.bf16.gmra.mxu0 %v1185
    %v1348 = vpop.f32.mrf.mxu0
    %v1349 = vadd.f32 %v1216, %v1348
    %v1350 = vpop.f32.mrf.mxu0
    %v1351 = vpop.f32.mrf.mxu0
    %v1352 = vadd.f32 %v1216, %v1351
    %v1353 = vpop.f32.mrf.mxu0
    %1354 = vmatprep.mubr.bf16.mxu0 0
    %1355 = vmatmul.mubr.bf16.gmra.mxu0 %v1186
    %v1356 = vpop.f32.mrf.mxu0
    %v1357 = vadd.f32 %v1216, %v1356
    %v1358 = vpop.f32.mrf.mxu0
    %v1359 = vpop.f32.mrf.mxu0
    %v1360 = vadd.f32 %v1216, %v1359
    %v1361 = vpop.f32.mrf.mxu0
    %1362 = vmatprep.mubr.bf16.mxu0 0
    %1363 = vmatmul.mubr.bf16.gmra.mxu0 %v1187
    %v1364 = vpop.f32.mrf.mxu0
    %v1365 = vadd.f32 %v1216, %v1364
    %v1366 = vpop.f32.mrf.mxu0
    %v1367 = vpop.f32.mrf.mxu0
    %v1368 = vadd.f32 %v1216, %v1367
    %v1369 = vpop.f32.mrf.mxu0
    %1370 = vmatprep.mubr.bf16.mxu0 0
    %1371 = vmatmul.mubr.bf16.gmra.mxu0 %v1188
    %v1372 = vpop.f32.mrf.mxu0
    %v1373 = vadd.f32 %v1216, %v1372
    %v1374 = vpop.f32.mrf.mxu0
    %v1375 = vpop.f32.mrf.mxu0
    %v1376 = vadd.f32 %v1216, %v1375
    %v1377 = vpop.f32.mrf.mxu0
    %1378 = vmatprep.mubr.bf16.mxu0 0
    %1379 = vmatmul.mubr.bf16.gmra.mxu0 %v1189
    %v1380 = vpop.f32.mrf.mxu0
    %v1381 = vadd.f32 %v1216, %v1380
    %v1382 = vpop.f32.mrf.mxu0
    %v1383 = vpop.f32.mrf.mxu0
    %v1384 = vadd.f32 %v1216, %v1383
    %v1385 = vpop.f32.mrf.mxu0
    %1386 = vmatprep.mubr.bf16.mxu0 0
    %1387 = vmatmul.mubr.bf16.gmra.mxu0 %v1190
    %v1388 = vpop.f32.mrf.mxu0
    %v1389 = vadd.f32 %v1216, %v1388
    %v1390 = vpop.f32.mrf.mxu0
    %v1391 = vpop.f32.mrf.mxu0
    %v1392 = vadd.f32 %v1216, %v1391
    %v1393 = vpop.f32.mrf.mxu0
    %1394 = vmatprep.mubr.bf16.mxu0 0
    %1395 = vmatmul.mubr.bf16.gmra.mxu0 %v1191
    %v1396 = vpop.f32.mrf.mxu0
    %v1397 = vadd.f32 %v1216, %v1396
    %v1398 = vpop.f32.mrf.mxu0
    %v1399 = vpop.f32.mrf.mxu0
    %v1400 = vadd.f32 %v1216, %v1399
    %v1401 = vpop.f32.mrf.mxu0
    %1402 = vmatprep.mubr.bf16.mxu0 0
    %1403 = vmatmul.mubr.bf16.gmra.mxu0 %v1192
    %v1404 = vpop.f32.mrf.mxu0
    %v1405 = vadd.f32 %v1216, %v1404
    %v1406 = vpop.f32.mrf.mxu0
    %v1407 = vpop.f32.mrf.mxu0
    %v1408 = vadd.f32 %v1216, %v1407
    %v1409 = vpop.f32.mrf.mxu0
    %1410 = vmatprep.mubr.bf16.mxu0 0
    %1411 = vmatmul.mubr.bf16.gmra.mxu0 %v1193
    %v1412 = vpop.f32.mrf.mxu0
    %v1413 = vadd.f32 %v1216, %v1412
    %v1414 = vpop.f32.mrf.mxu0
    %v1415 = vpop.f32.mrf.mxu0
    %v1416 = vadd.f32 %v1216, %v1415
    %v1417 = vpop.f32.mrf.mxu0
    %1418 = vmatprep.mubr.bf16.mxu0 0
    %1419 = vmatmul.mubr.bf16.gmra.mxu0 %v1194
    %v1420 = vpop.f32.mrf.mxu0
    %v1421 = vadd.f32 %v1216, %v1420
    %v1422 = vpop.f32.mrf.mxu0
    %v1423 = vpop.f32.mrf.mxu0
    %v1424 = vadd.f32 %v1216, %v1423
    %v1425 = vpop.f32.mrf.mxu0
    %1426 = vdwg.mxu0
    %v1427 = vpack.c.bf16 %v1304, %v1301
    %v1428 = vpack.c.bf16 %v1312, %v1309
    %v1429 = vpack.c.bf16 %v1320, %v1317
    %v1430 = vpack.c.bf16 %v1328, %v1325
    %v1431 = vpack.c.bf16 %v1336, %v1333
    %v1432 = vpack.c.bf16 %v1344, %v1341
    %v1433 = vpack.c.bf16 %v1352, %v1349
    %v1434 = vpack.c.bf16 %v1360, %v1357
    %v1435 = vpack.c.bf16 %v1368, %v1365
    %v1436 = vpack.c.bf16 %v1376, %v1373
    %v1437 = vpack.c.bf16 %v1384, %v1381
    %v1438 = vpack.c.bf16 %v1392, %v1389
    %v1439 = vpack.c.bf16 %v1400, %v1397
    %v1440 = vpack.c.bf16 %v1408, %v1405
    %v1441 = vpack.c.bf16 %v1416, %v1413
    %v1442 = vpack.c.bf16 %v1424, %v1421
    %v1459 = vunpack.c.l.b16 %v1427
    %v1460 = vunpack.c.h.b16 %v1427
    %v1461 = vunpack.c.l.b16 %v1428
    %v1462 = vunpack.c.h.b16 %v1428
    %v1463 = vunpack.c.l.b16 %v1429
    %v1464 = vunpack.c.h.b16 %v1429
    %v1465 = vunpack.c.l.b16 %v1430
    %v1466 = vunpack.c.h.b16 %v1430
    %v1467 = vunpack.c.l.b16 %v1431
    %v1468 = vunpack.c.h.b16 %v1431
    %v1469 = vunpack.c.l.b16 %v1432
    %v1470 = vunpack.c.h.b16 %v1432
    %v1471 = vunpack.c.l.b16 %v1433
    %v1472 = vunpack.c.h.b16 %v1433
    %v1473 = vunpack.c.l.b16 %v1434
    %v1474 = vunpack.c.h.b16 %v1434
    %v1475 = vunpack.c.l.b16 %v1435
    %v1476 = vunpack.c.h.b16 %v1435
    %v1477 = vunpack.c.l.b16 %v1436
    %v1478 = vunpack.c.h.b16 %v1436
    %v1479 = vunpack.c.l.b16 %v1437
    %v1480 = vunpack.c.h.b16 %v1437
    %v1481 = vunpack.c.l.b16 %v1438
    %v1482 = vunpack.c.h.b16 %v1438
    %v1483 = vunpack.c.l.b16 %v1439
    %v1484 = vunpack.c.h.b16 %v1439
    %v1485 = vunpack.c.l.b16 %v1440
    %v1486 = vunpack.c.h.b16 %v1440
    %v1487 = vunpack.c.l.b16 %v1441
    %v1488 = vunpack.c.h.b16 %v1441
    %v1489 = vunpack.c.l.b16 %v1442
    %v1490 = vunpack.c.h.b16 %v1442
    %v1491 = vpack.c.b16 %v1459, %v1459
    %v1492 = vpack.c.b16 %v1460, %v1460
    %v1493 = vpack.c.b16 %v1461, %v1461
    %v1494 = vpack.c.b16 %v1462, %v1462
    %v1495 = vpack.c.b16 %v1463, %v1463
    %v1496 = vpack.c.b16 %v1464, %v1464
    %v1497 = vpack.c.b16 %v1465, %v1465
    %v1498 = vpack.c.b16 %v1466, %v1466
    %v1499 = vpack.c.b16 %v1467, %v1467
    %v1500 = vpack.c.b16 %v1468, %v1468
    %v1501 = vpack.c.b16 %v1469, %v1469
    %v1502 = vpack.c.b16 %v1470, %v1470
    %v1503 = vpack.c.b16 %v1471, %v1471
    %v1504 = vpack.c.b16 %v1472, %v1472
    %v1505 = vpack.c.b16 %v1473, %v1473
    %v1506 = vpack.c.b16 %v1474, %v1474
    %v1507 = vpack.c.b16 %v1475, %v1475
    %v1508 = vpack.c.b16 %v1476, %v1476
    %v1509 = vpack.c.b16 %v1477, %v1477
    %v1510 = vpack.c.b16 %v1478, %v1478
    %v1511 = vpack.c.b16 %v1479, %v1479
    %v1512 = vpack.c.b16 %v1480, %v1480
    %v1513 = vpack.c.b16 %v1481, %v1481
    %v1514 = vpack.c.b16 %v1482, %v1482
    %v1515 = vpack.c.b16 %v1483, %v1483
    %v1516 = vpack.c.b16 %v1484, %v1484
    %v1517 = vpack.c.b16 %v1485, %v1485
    %v1518 = vpack.c.b16 %v1486, %v1486
    %v1519 = vpack.c.b16 %v1487, %v1487
    %v1520 = vpack.c.b16 %v1488, %v1488
    %v1521 = vpack.c.b16 %v1489, %v1489
    %v1522 = vpack.c.b16 %v1490, %v1490
    %1555 = vst [vmem:[%s7] sm:$0xf] %v1491
    %1556 = vst [vmem:[%s7 + $0x4] sm:$0xf] %v1492
    %1557 = vst [vmem:[%s7 + $0x8] sm:$0xf] %v1493
    %1558 = vst [vmem:[%s7 + $0xc] sm:$0xf] %v1494
    %1559 = vst [vmem:[%s7 + $0x10] sm:$0xf] %v1495
    %1560 = vst [vmem:[%s7 + $0x14] sm:$0xf] %v1496
    %1561 = vst [vmem:[%s7 + $0x18] sm:$0xf] %v1497
    %1562 = vst [vmem:[%s7 + $0x1c] sm:$0xf] %v1498
    %1563 = vst [vmem:[%s7 + $0x20] sm:$0xf] %v1499
    %1564 = vst [vmem:[%s7 + $0x24] sm:$0xf] %v1500
    %1565 = vst [vmem:[%s7 + $0x28] sm:$0xf] %v1501
    %1566 = vst [vmem:[%s7 + $0x2c] sm:$0xf] %v1502
    %1567 = vst [vmem:[%s7 + $0x30] sm:$0xf] %v1503
    %1568 = vst [vmem:[%s7 + $0x34] sm:$0xf] %v1504
    %1569 = vst [vmem:[%s7 + $0x38] sm:$0xf] %v1505
    %1570 = vst [vmem:[%s7 + $0x3c] sm:$0xf] %v1506
    %1571 = vst [vmem:[%s7 + $0x40] sm:$0xf] %v1507
    %1572 = vst [vmem:[%s7 + $0x44] sm:$0xf] %v1508
    %1573 = vst [vmem:[%s7 + $0x48] sm:$0xf] %v1509
    %1574 = vst [vmem:[%s7 + $0x4c] sm:$0xf] %v1510
    %1575 = vst [vmem:[%s7 + $0x50] sm:$0xf] %v1511
    %1576 = vst [vmem:[%s7 + $0x54] sm:$0xf] %v1512
    %1577 = vst [vmem:[%s7 + $0x58] sm:$0xf] %v1513
    %1578 = vst [vmem:[%s7 + $0x5c] sm:$0xf] %v1514
    %1579 = vst [vmem:[%s7 + $0x60] sm:$0xf] %v1515
    %1580 = vst [vmem:[%s7 + $0x64] sm:$0xf] %v1516
    %1581 = vst [vmem:[%s7 + $0x68] sm:$0xf] %v1517
    %1582 = vst [vmem:[%s7 + $0x6c] sm:$0xf] %v1518
    %1583 = vst [vmem:[%s7 + $0x70] sm:$0xf] %v1519
    %1584 = vst [vmem:[%s7 + $0x74] sm:$0xf] %v1520
    %1585 = vst [vmem:[%s7 + $0x78] sm:$0xf] %v1521
    %1586 = vst [vmem:[%s7 + $0x7c] sm:$0xf] %v1522
  $region37: #{gcn_forward.2} parent=0 // pred_fallthru
    _
  // Predicated region
  $region38: #{gcn_forward.2} parent=0 // pred_check
    _
  $region39: #{gcn_forward.2} parent=0 // pred_check_branch
    %1588 = sbr.rel (0) target = $region41
  $region40: #{gcn_forward.2} parent=0 // pred_region
    _
  $region41: #{gcn_forward.2} parent=0 // pred_fallthru
    _
  // Predicated region
  $region42: #{gcn_forward.2} parent=0 // pred_check
    _
  $region43: #{gcn_forward.2} parent=0 // pred_check_branch
    %1590 = sbr.rel (0) target = $region45
  $region44: #{gcn_forward.2} parent=0 // pred_region
    _
  $region45: #{gcn_forward.2} parent=0 // pred_fallthru
    _

</llo_original>
